<compile_context>
chip_gen: v5e
topology: v5e:2x2
jax: 0.10.0
libtpu: 0.0.40
codegen_flags: <defaults>
</compile_context>

<pallas_src>
import math

import jax
import jax.numpy as jnp
from jax.experimental import pallas as pl
from jax.experimental.pallas import tpu as pltpu

D_MODEL = 32
NUM_HEADS = 4
D_FF = 64
DROPOUT = 0.1  # nn.Dropout has no inference-time effect.
# TODO(synk): train-mode dropout is not implemented (eval-mode semantics only).


def _layernorm(z, g_ref, b_ref, eps=1e-5):
    mu = jnp.mean(z, axis=-1, keepdims=True)
    var = jnp.mean((z - mu) ** 2, axis=-1, keepdims=True)
    return (z - mu) * jax.lax.rsqrt(var + eps) * g_ref[...] + b_ref[...]


def encoder_layer_kernel(
    x_ref, mask_ref,
    wqkv_ref, bqkv_ref, wo_ref, bo_ref,
    w1_ref, b1_ref, w2_ref, b2_ref,
    g1_ref, be1_ref, g2_ref, be2_ref,
    o_ref,
):
    Bt, S, D = x_ref.shape
    H = NUM_HEADS
    dk = D // H

    # Residual / LN / softmax math stays f32; only MXU operands go bf16.
    x = x_ref[...].astype(jnp.float32)                      # (Bt, S, D)
    x2d = x.reshape(Bt * S, D)                              # leading-dim merge (safe)

    # Additive mask built in-kernel from the raw 0/1 mask (one VPU select per
    # block); nothing derived round-trips HBM, and any nonzero value attends.
    bias = jnp.where(mask_ref[...] == 0.0,
                     jnp.float32(-1e9), jnp.float32(0.0))   # (Bt, S, S)

    # Fused QKV projection (1/sqrt(d_k) folded into the Q slice wrapper-side);
    # bf16 operands on the MXU, f32 accumulation + f32 bias.
    qkv = jnp.dot(x2d.astype(jnp.bfloat16), wqkv_ref[...],
                  preferred_element_type=jnp.float32) + bqkv_ref[...]  # (Bt*S, 3D)

    # Multi-head attention.  NOTE (review: "batch heads into one einsum"):
    # a head-batched formulation needs a 2-batch-dim dot_general or a 4-D
    # (S,H) transpose, neither reliably lowered by Mosaic, so the static H=4
    # loop with single-batch-dim 3-D einsums is kept (lane slices + leading-dim
    # reshapes only).  W_o is applied per head from its (dk, D) leading-dim
    # slice and accumulated on the MXU (no lane-axis concat of heads).
    acc = None
    for h in range(H):
        qh = qkv[:, 0 * D + h * dk:0 * D + (h + 1) * dk].reshape(Bt, S, dk)
        kh = qkv[:, 1 * D + h * dk:1 * D + (h + 1) * dk].reshape(Bt, S, dk)
        vh = qkv[:, 2 * D + h * dk:2 * D + (h + 1) * dk].reshape(Bt, S, dk)

        scores = jnp.einsum(
            "bqd,bkd->bqk", qh.astype(jnp.bfloat16), kh.astype(jnp.bfloat16),
            preferred_element_type=jnp.float32) + bias              # (Bt, S, S)
        m = jnp.max(scores, axis=-1, keepdims=True)
        e = jnp.exp(scores - m)                                     # EUP, f32
        denom = jnp.sum(e, axis=-1, keepdims=True)
        # approx reciprocal lowers to the EUP slot (free next to the exp); the
        # tiny relative error is a uniform rescale of a convex combination.
        probs = e * pl.reciprocal(denom, approx=True)
        ctx = jnp.einsum(
            "bqk,bkd->bqd", probs.astype(jnp.bfloat16), vh.astype(jnp.bfloat16),
            preferred_element_type=jnp.float32)                     # (Bt, S, dk)

        part = jnp.dot(ctx.reshape(Bt * S, dk).astype(jnp.bfloat16), wo_ref[h],
                       preferred_element_type=jnp.float32)          # (Bt*S, D)
        acc = part if acc is None else acc + part

    attn_out = acc + bo_ref[...]

    # residual + norm1 (dropout == identity at inference)
    x1 = _layernorm(x2d + attn_out, g1_ref, be1_ref)

    # position-wise feed-forward (bf16 MXU operands, f32 elementwise)
    hdd = jnp.maximum(
        jnp.dot(x1.astype(jnp.bfloat16), w1_ref[...],
                preferred_element_type=jnp.float32) + b1_ref[...], 0.0)
    ff = jnp.dot(hdd.astype(jnp.bfloat16), w2_ref[...],
                 preferred_element_type=jnp.float32) + b2_ref[...]

    # residual + norm2
    x2 = _layernorm(x1 + ff, g2_ref, be2_ref)

    # NOTE (review: lane-dense output): D_MODEL=32 < 128 lanes so this store is
    # a masked vst.  The suggested (Bt, S*D) output slab needs an in-kernel
    # lane-merging reshape Mosaic does not lower reliably at these shapes; at
    # realistic D_MODEL >= 128 the store is already lane-dense.
    # TODO(synk): revisit lane-dense output via pltpu.einshape for tiny D.
    o_ref[...] = x2.reshape(Bt, S, D).astype(o_ref.dtype)


# ------------------------- block-size / VMEM heuristics ---------------------
def _vmem_capacity_bytes():
    try:
        return int(pltpu.get_tpu_info().vmem_capacity_bytes)
    except Exception:
        return 64 << 20  # conservative fallback (v7x per-core VMEM)


def _is_multi_core_chip():
    try:
        kind = jax.devices()[0].device_kind.lower()
    except Exception:
        return False
    return any(t in kind for t in ("v7", "v4", "v3"))


def _block_vmem_bytes(bt, S, D, F, H):
    """Per-grid-step VMEM footprint: double-buffered streamed blocks +
    (double-buffered) resident weights + live f32 intermediates — not just
    x + mask + out."""
    f32, bf16 = 4, 2
    rows = bt * S
    streamed = 2 * (2 * rows * D + bt * S * S) * f32            # x, out, mask
    weights = 2 * ((3 * D * D + D * D + D * F + F * D) * bf16   # wqkv, wo, w1, w2
                   + (3 * D + D + F + D + 4 * D) * f32)         # biases + LN params
    inter = (rows * D                    # x2d
             + rows * 3 * D              # qkv
             + bt * S * S                # additive mask
             + H * bt * S * S            # per-head scores/probs (static loop live)
             + rows * (4 * D + F)        # acc / attn_out / x1 / x2 + hidden
             + rows * D) * f32           # ff
    return streamed + weights + inter


def _choose_block_b(B, S, D, F, H):
    """Largest batch block whose full footprint fits a generation-aware VMEM
    budget.  On 2-TensorCore chips (v7x) prefer an even grid of >= 2 steps so
    dimension_semantics=('parallel',) feeds both cores; on single-TC chips
    (v5e/v6e) extra grid steps are pure ~0.35 us overhead, so maximise Bt
    (which also drives the flattened MXU M-dim Bt*S toward >= 256)."""
    budget = int(0.6 * _vmem_capacity_bytes())
    divisors = [d for d in range(1, B + 1) if B % d == 0]
    fits = [d for d in divisors if _block_vmem_bytes(d, S, D, F, H) <= budget] or [1]
    if _is_multi_core_chip():
        even = [d for d in fits if (B // d) >= 2 and (B // d) % 2 == 0]
        if even:
            return max(even)
        multi = [d for d in fits if (B // d) >= 2]
        if multi:
            return max(multi)
    return max(fits)


# ----------------------------------- wrapper --------------------------------
def encoder_layer(x, mask, params, *, block_b=None, single_buffer_weights=False):
    """x: (B, S, D) f32; mask: (B, S, S), nonzero = attend (torch semantics)."""
    B, S, D = x.shape
    dk = D // NUM_HEADS
    scale = 1.0 / math.sqrt(dk)

    # Fused QKV weight with the attention scale folded into the Q slice;
    # weights stored bf16 (halved DMA + VMEM residency), biases stay f32.
    wqkvT = jnp.concatenate(
        [params["wqT"] * scale, params["wkT"], params["wvT"]], axis=1
    ).astype(jnp.bfloat16)                                           # (D, 3D)
    bqkv = jnp.concatenate(
        [params["bq"] * scale, params["bk"], params["bv"]], axis=1)  # (1, 3D) f32
    woT = params["woT"].astype(jnp.bfloat16).reshape(NUM_HEADS, dk, D)
    w1T = params["w1T"].astype(jnp.bfloat16)
    w2T = params["w2T"].astype(jnp.bfloat16)

    # Raw 0/1 mask passed straight through; the additive (-1e9) expansion is
    # done in-kernel, so no derived (B,S,S) f32 mask round-trips HBM.
    # TODO(synk): at realistic S pass the mask as int8 (4x less DMA) or as a
    # single shared (S,S) block when it is batch-invariant.
    mask_f = mask.astype(jnp.float32)

    Bt = _choose_block_b(B, S, D, D_FF, NUM_HEADS) if block_b is None else block_b
    assert B % Bt == 0, "batch must be divisible by the chosen batch block"
    nb = B // Bt

    param_list = [
        wqkvT, bqkv, woT, params["bo"],
        w1T, params["b1"], w2T, params["b2"],
        params["g1"], params["be1"], params["g2"], params["be2"],
    ]

    def _weight_spec(p):
        idx = lambda b, _n=p.ndim: (0,) * _n
        if single_buffer_weights:
            # Resident weights never re-fetch; single-buffering halves their
            # VMEM (matters on v7x's 64 MiB at realistic D_MODEL / D_FF).
            return pl.BlockSpec(p.shape, idx, pipeline_mode=pl.Buffered(1))
        return pl.BlockSpec(p.shape, idx)

    in_specs = [
        pl.BlockSpec((Bt, S, D), lambda b: (b, 0, 0)),
        pl.BlockSpec((Bt, S, S), lambda b: (b, 0, 0)),
    ] + [_weight_spec(p) for p in param_list]

    vmem_limit = int(min(0.75 * _vmem_capacity_bytes(), 100 << 20))

    return pl.pallas_call(
        encoder_layer_kernel,
        out_shape=jax.ShapeDtypeStruct((B, S, D), jnp.float32),
        grid_spec=pltpu.PrefetchScalarGridSpec(
            num_scalar_prefetch=0,
            grid=(nb,),
            in_specs=in_specs,
            out_specs=pl.BlockSpec((Bt, S, D), lambda b: (b, 0, 0)),
        ),
        compiler_params=pltpu.CompilerParams(
            dimension_semantics=("parallel",),
            vmem_limit_bytes=vmem_limit),
    )(x, mask_f, *param_list)


# ---------------- pure-JAX f32 reference (mirrors the PyTorch forward) ------
def reference(x, mask, params):
    def lin(z, wT, b):
        return z @ wT + b[0]

    B, S, D = x.shape
    H, dk = NUM_HEADS, D // NUM_HEADS
    q = lin(x, params["wqT"], params["bq"]).reshape(B, S, H, dk).transpose(0, 2, 1, 3)
    k = lin(x, params["wkT"], params["bk"]).reshape(B, S, H, dk).transpose(0, 2, 1, 3)
    v = lin(x, params["wvT"], params["bv"]).reshape(B, S, H, dk).transpose(0, 2, 1, 3)
    scores = jnp.einsum("bhqd,bhkd->bhqk", q, k) / math.sqrt(dk)
    scores = jnp.where(mask[:, None, :, :] == 0, -1e9, scores)
    probs = jax.nn.softmax(scores, axis=-1)
    attn = jnp.einsum("bhqk,bhkd->bhqd", probs, v).transpose(0, 2, 1, 3).reshape(B, S, D)
    attn_out = lin(attn, params["woT"], params["bo"])

    def ln(z, g, b):
        mu = jnp.mean(z, -1, keepdims=True)
        var = jnp.mean((z - mu) ** 2, -1, keepdims=True)
        return (z - mu) / jnp.sqrt(var + 1e-5) * g[0] + b[0]

    x1 = ln(x + attn_out, params["g1"], params["be1"])
    ff = lin(jnp.maximum(lin(x1, params["w1T"], params["b1"]), 0.0),
             params["w2T"], params["b2"])
    return ln(x1 + ff, params["g2"], params["be2"])


def init_params(key):
    ks = jax.random.split(key, 12)

    def w(k, shape, fan_in):
        return (jax.random.uniform(k, shape, jnp.float32, -1.0, 1.0)
                / math.sqrt(fan_in))

    D, F = D_MODEL, D_FF
    return {
        "wqT": w(ks[0], (D, D), D), "bq": w(ks[1], (1, D), D),
        "wkT": w(ks[2], (D, D), D), "bk": w(ks[3], (1, D), D),
        "wvT": w(ks[4], (D, D), D), "bv": w(ks[5], (1, D), D),
        "woT": w(ks[6], (D, D), D), "bo": w(ks[7], (1, D), D),
        "w1T": w(ks[8], (D, F), D), "b1": w(ks[9], (1, F), D),
        "w2T": w(ks[10], (F, D), F), "b2": w(ks[11], (1, D), F),
        "g1": jnp.ones((1, D), jnp.float32), "be1": jnp.zeros((1, D), jnp.float32),
        "g2": jnp.ones((1, D), jnp.float32), "be2": jnp.zeros((1, D), jnp.float32),
    }


if __name__ == "__main__":
    key = jax.random.PRNGKey(0)
    kx, kp = jax.random.split(key)

    B, S = 4, 8
    x = jax.random.normal(kx, (B, S, D_MODEL), jnp.float32)
    # causal mask (0 => masked), broadcast over heads like a (B,1,S,S) torch mask
    mask = jnp.tile(jnp.tril(jnp.ones((S, S), jnp.float32))[None], (B, 1, 1))

    params = init_params(kp)

    out = jax.block_until_ready(encoder_layer(x, mask, params))
    ref = reference(x, mask, params)

    assert out.shape == (B, S, D_MODEL)
    # bf16 MXU operands in the kernel vs. the pure-f32 reference -> loosened
    # tolerance (review note); observed error is well inside this bound.
    err = float(jnp.max(jnp.abs(out - ref)))
    assert jnp.allclose(out, ref, atol=5e-2, rtol=5e-2), err
    print("KERNEL_OK")
</pallas_src>

<mosaic_0001>
module attributes {stable_mosaic.version = 11 : i64} {
  func.func @encoder_layer_kernel(%arg0: i32, %arg1: memref<4x8x32xf32, #tpu.memory_space<vmem>>, %arg2: memref<4x8x8xf32, #tpu.memory_space<vmem>>, %arg3: memref<32x96xbf16, #tpu.memory_space<vmem>>, %arg4: memref<1x96xf32, #tpu.memory_space<vmem>>, %arg5: memref<4x8x32xbf16, #tpu.memory_space<vmem>>, %arg6: memref<1x32xf32, #tpu.memory_space<vmem>>, %arg7: memref<32x64xbf16, #tpu.memory_space<vmem>>, %arg8: memref<1x64xf32, #tpu.memory_space<vmem>>, %arg9: memref<64x32xbf16, #tpu.memory_space<vmem>>, %arg10: memref<1x32xf32, #tpu.memory_space<vmem>>, %arg11: memref<1x32xf32, #tpu.memory_space<vmem>>, %arg12: memref<1x32xf32, #tpu.memory_space<vmem>>, %arg13: memref<1x32xf32, #tpu.memory_space<vmem>>, %arg14: memref<1x32xf32, #tpu.memory_space<vmem>>, %arg15: memref<4x8x32xf32, #tpu.memory_space<vmem>>) attributes {dimension_semantics = [#tpu.dimension_semantics<parallel>], iteration_bounds = array<i64: 1>, scalar_prefetch = 0 : i64, scratch_operands = 0 : i64, tpu.core_type = #tpu.core_type<tc>, window_params = [{transform_indices = @transform_0, window_bounds = array<i64: 4, 8, 32>}, {transform_indices = @transform_1, window_bounds = array<i64: 4, 8, 8>}, {pipeline_mode = #tpu.pipeline_mode<synchronous>, transform_indices = @transform_2, window_bounds = array<i64: 32, 96>}, {pipeline_mode = #tpu.pipeline_mode<synchronous>, transform_indices = @transform_3, window_bounds = array<i64: 1, 96>}, {pipeline_mode = #tpu.pipeline_mode<synchronous>, transform_indices = @transform_4, window_bounds = array<i64: 4, 8, 32>}, {pipeline_mode = #tpu.pipeline_mode<synchronous>, transform_indices = @transform_5, window_bounds = array<i64: 1, 32>}, {pipeline_mode = #tpu.pipeline_mode<synchronous>, transform_indices = @transform_6, window_bounds = array<i64: 32, 64>}, {pipeline_mode = #tpu.pipeline_mode<synchronous>, transform_indices = @transform_7, window_bounds = array<i64: 1, 64>}, {pipeline_mode = #tpu.pipeline_mode<synchronous>, transform_indices = @transform_8, window_bounds = array<i64: 64, 32>}, {pipeline_mode = #tpu.pipeline_mode<synchronous>, transform_indices = @transform_9, window_bounds = array<i64: 1, 32>}, {pipeline_mode = #tpu.pipeline_mode<synchronous>, transform_indices = @transform_10, window_bounds = array<i64: 1, 32>}, {pipeline_mode = #tpu.pipeline_mode<synchronous>, transform_indices = @transform_11, window_bounds = array<i64: 1, 32>}, {pipeline_mode = #tpu.pipeline_mode<synchronous>, transform_indices = @transform_12, window_bounds = array<i64: 1, 32>}, {pipeline_mode = #tpu.pipeline_mode<synchronous>, transform_indices = @transform_13, window_bounds = array<i64: 1, 32>}, {transform_indices = @transform_14, window_bounds = array<i64: 4, 8, 32>}]} {
    %c0 = arith.constant 0 : index
    %c0_0 = arith.constant 0 : index
    %c0_1 = arith.constant 0 : index
    %0 = vector.load %arg1[%c0, %c0_0, %c0_1] : memref<4x8x32xf32, #tpu.memory_space<vmem>>, vector<4x8x32xf32>
    %1 = vector.shape_cast %0 : vector<4x8x32xf32> to vector<32x32xf32>
    %c0_2 = arith.constant 0 : index
    %c0_3 = arith.constant 0 : index
    %c0_4 = arith.constant 0 : index
    %2 = vector.load %arg2[%c0_2, %c0_3, %c0_4] : memref<4x8x8xf32, #tpu.memory_space<vmem>>, vector<4x8x8xf32>
    %cst = arith.constant 0.000000e+00 : f32
    %3 = vector.broadcast %cst : f32 to vector<4x8x8xf32>
    %4 = arith.cmpf oeq, %2, %3 : vector<4x8x8xf32>
    %cst_5 = arith.constant -1.000000e+09 : f32
    %cst_6 = arith.constant 0.000000e+00 : f32
    %5 = vector.broadcast %cst_5 : f32 to vector<4x8x8xf32>
    %6 = vector.broadcast %cst_6 : f32 to vector<4x8x8xf32>
    %7 = arith.select %4, %5, %6 : vector<4x8x8xi1>, vector<4x8x8xf32>
    %8 = arith.truncf %1 : vector<32x32xf32> to vector<32x32xbf16>
    %c0_7 = arith.constant 0 : index
    %c0_8 = arith.constant 0 : index
    %9 = vector.load %arg3[%c0_7, %c0_8] : memref<32x96xbf16, #tpu.memory_space<vmem>>, vector<32x96xbf16>
    %cst_9 = arith.constant dense<0.000000e+00> : vector<32x96xf32>
    %10 = tpu.matmul %8, %9, %cst_9 {dimension_numbers = #tpu.dot_dimension_numbers<[1], [0], [0], [1], [0, 0, 1, 1], [], []>} : vector<32x32xbf16>, vector<32x96xbf16>, vector<32x96xf32> -> vector<32x96xf32>
    %c0_10 = arith.constant 0 : index
    %c0_11 = arith.constant 0 : index
    %11 = vector.load %arg4[%c0_10, %c0_11] : memref<1x96xf32, #tpu.memory_space<vmem>>, vector<1x96xf32>
    %12 = vector.broadcast %11 : vector<1x96xf32> to vector<32x96xf32>
    %13 = arith.addf %10, %12 : vector<32x96xf32>
    %14 = vector.extract_strided_slice %13 {offsets = [0, 0], sizes = [32, 8], strides = [1, 1]} : vector<32x96xf32> to vector<32x8xf32>
    %15 = vector.shape_cast %14 : vector<32x8xf32> to vector<4x8x8xf32>
    %16 = vector.extract_strided_slice %13 {offsets = [0, 32], sizes = [32, 8], strides = [1, 1]} : vector<32x96xf32> to vector<32x8xf32>
    %17 = vector.shape_cast %16 : vector<32x8xf32> to vector<4x8x8xf32>
    %18 = vector.extract_strided_slice %13 {offsets = [0, 64], sizes = [32, 8], strides = [1, 1]} : vector<32x96xf32> to vector<32x8xf32>
    %19 = vector.shape_cast %18 : vector<32x8xf32> to vector<4x8x8xf32>
    %20 = arith.truncf %15 : vector<4x8x8xf32> to vector<4x8x8xbf16>
    %21 = arith.truncf %17 : vector<4x8x8xf32> to vector<4x8x8xbf16>
    "tpu.trace_start"() <{level = 10 : i32, message = "bqd,bkd->bqk"}> : () -> ()
    %cst_12 = arith.constant dense<0.000000e+00> : vector<4x8x8xf32>
    %22 = tpu.matmul %20, %21, %cst_12 {dimension_numbers = #tpu.dot_dimension_numbers<[2], [2], [1], [1], [0, 0, 0, 1, 1, 1], [0], [0]>} : vector<4x8x8xbf16>, vector<4x8x8xbf16>, vector<4x8x8xf32> -> vector<4x8x8xf32>
    "tpu.trace_stop"() : () -> ()
    %23 = arith.addf %22, %7 : vector<4x8x8xf32>
    %cst_13 = arith.constant dense<0xFF800000> : vector<4x8xf32>
    %24 = vector.multi_reduction <maximumf>, %23, %cst_13 [2] : vector<4x8x8xf32> to vector<4x8xf32>
    %25 = vector.shape_cast %24 : vector<4x8xf32> to vector<4x8x1xf32>
    %26 = vector.broadcast %25 : vector<4x8x1xf32> to vector<4x8x8xf32>
    %27 = arith.subf %23, %26 : vector<4x8x8xf32>
    %28 = math.exp %27 : vector<4x8x8xf32>
    %cst_14 = arith.constant dense<0.000000e+00> : vector<4x8xf32>
    %29 = vector.multi_reduction <add>, %28, %cst_14 [2] : vector<4x8x8xf32> to vector<4x8xf32>
    %30 = vector.shape_cast %29 : vector<4x8xf32> to vector<4x8x1xf32>
    %31 = tpu.reciprocal %30 {approx = true} : vector<4x8x1xf32> -> vector<4x8x1xf32>
    %32 = vector.broadcast %31 : vector<4x8x1xf32> to vector<4x8x8xf32>
    %33 = arith.mulf %28, %32 : vector<4x8x8xf32>
    %34 = arith.truncf %33 : vector<4x8x8xf32> to vector<4x8x8xbf16>
    %35 = arith.truncf %19 : vector<4x8x8xf32> to vector<4x8x8xbf16>
    "tpu.trace_start"() <{level = 10 : i32, message = "bqk,bkd->bqd"}> : () -> ()
    %cst_15 = arith.constant dense<0.000000e+00> : vector<4x8x8xf32>
    %36 = tpu.matmul %34, %35, %cst_15 {dimension_numbers = #tpu.dot_dimension_numbers<[2], [1], [1], [2], [0, 0, 0, 1, 1, 2], [0], [0]>} : vector<4x8x8xbf16>, vector<4x8x8xbf16>, vector<4x8x8xf32> -> vector<4x8x8xf32>
    "tpu.trace_stop"() : () -> ()
    %37 = vector.shape_cast %36 : vector<4x8x8xf32> to vector<32x8xf32>
    %38 = arith.truncf %37 : vector<32x8xf32> to vector<32x8xbf16>
    %c0_16 = arith.constant 0 : index
    %c0_17 = arith.constant 0 : index
    %c0_18 = arith.constant 0 : index
    %39 = vector.load %arg5[%c0_16, %c0_17, %c0_18] : memref<4x8x32xbf16, #tpu.memory_space<vmem>>, vector<1x8x32xbf16>
    %40 = vector.shape_cast %39 : vector<1x8x32xbf16> to vector<8x32xbf16>
    %cst_19 = arith.constant dense<0.000000e+00> : vector<32x32xf32>
    %41 = tpu.matmul %38, %40, %cst_19 {dimension_numbers = #tpu.dot_dimension_numbers<[1], [0], [0], [1], [0, 0, 1, 1], [], []>} : vector<32x8xbf16>, vector<8x32xbf16>, vector<32x32xf32> -> vector<32x32xf32>
    %42 = vector.extract_strided_slice %13 {offsets = [0, 8], sizes = [32, 8], strides = [1, 1]} : vector<32x96xf32> to vector<32x8xf32>
    %43 = vector.shape_cast %42 : vector<32x8xf32> to vector<4x8x8xf32>
    %44 = vector.extract_strided_slice %13 {offsets = [0, 40], sizes = [32, 8], strides = [1, 1]} : vector<32x96xf32> to vector<32x8xf32>
    %45 = vector.shape_cast %44 : vector<32x8xf32> to vector<4x8x8xf32>
    %46 = vector.extract_strided_slice %13 {offsets = [0, 72], sizes = [32, 8], strides = [1, 1]} : vector<32x96xf32> to vector<32x8xf32>
    %47 = vector.shape_cast %46 : vector<32x8xf32> to vector<4x8x8xf32>
    %48 = arith.truncf %43 : vector<4x8x8xf32> to vector<4x8x8xbf16>
    %49 = arith.truncf %45 : vector<4x8x8xf32> to vector<4x8x8xbf16>
    "tpu.trace_start"() <{level = 10 : i32, message = "bqd,bkd->bqk"}> : () -> ()
    %cst_20 = arith.constant dense<0.000000e+00> : vector<4x8x8xf32>
    %50 = tpu.matmul %48, %49, %cst_20 {dimension_numbers = #tpu.dot_dimension_numbers<[2], [2], [1], [1], [0, 0, 0, 1, 1, 1], [0], [0]>} : vector<4x8x8xbf16>, vector<4x8x8xbf16>, vector<4x8x8xf32> -> vector<4x8x8xf32>
    "tpu.trace_stop"() : () -> ()
    %51 = arith.addf %50, %7 : vector<4x8x8xf32>
    %cst_21 = arith.constant dense<0xFF800000> : vector<4x8xf32>
    %52 = vector.multi_reduction <maximumf>, %51, %cst_21 [2] : vector<4x8x8xf32> to vector<4x8xf32>
    %53 = vector.shape_cast %52 : vector<4x8xf32> to vector<4x8x1xf32>
    %54 = vector.broadcast %53 : vector<4x8x1xf32> to vector<4x8x8xf32>
    %55 = arith.subf %51, %54 : vector<4x8x8xf32>
    %56 = math.exp %55 : vector<4x8x8xf32>
    %cst_22 = arith.constant dense<0.000000e+00> : vector<4x8xf32>
    %57 = vector.multi_reduction <add>, %56, %cst_22 [2] : vector<4x8x8xf32> to vector<4x8xf32>
    %58 = vector.shape_cast %57 : vector<4x8xf32> to vector<4x8x1xf32>
    %59 = tpu.reciprocal %58 {approx = true} : vector<4x8x1xf32> -> vector<4x8x1xf32>
    %60 = vector.broadcast %59 : vector<4x8x1xf32> to vector<4x8x8xf32>
    %61 = arith.mulf %56, %60 : vector<4x8x8xf32>
    %62 = arith.truncf %61 : vector<4x8x8xf32> to vector<4x8x8xbf16>
    %63 = arith.truncf %47 : vector<4x8x8xf32> to vector<4x8x8xbf16>
    "tpu.trace_start"() <{level = 10 : i32, message = "bqk,bkd->bqd"}> : () -> ()
    %cst_23 = arith.constant dense<0.000000e+00> : vector<4x8x8xf32>
    %64 = tpu.matmul %62, %63, %cst_23 {dimension_numbers = #tpu.dot_dimension_numbers<[2], [1], [1], [2], [0, 0, 0, 1, 1, 2], [0], [0]>} : vector<4x8x8xbf16>, vector<4x8x8xbf16>, vector<4x8x8xf32> -> vector<4x8x8xf32>
    "tpu.trace_stop"() : () -> ()
    %65 = vector.shape_cast %64 : vector<4x8x8xf32> to vector<32x8xf32>
    %66 = arith.truncf %65 : vector<32x8xf32> to vector<32x8xbf16>
    %c1 = arith.constant 1 : index
    %c0_24 = arith.constant 0 : index
    %c0_25 = arith.constant 0 : index
    %67 = vector.load %arg5[%c1, %c0_24, %c0_25] : memref<4x8x32xbf16, #tpu.memory_space<vmem>>, vector<1x8x32xbf16>
    %68 = vector.shape_cast %67 : vector<1x8x32xbf16> to vector<8x32xbf16>
    %cst_26 = arith.constant dense<0.000000e+00> : vector<32x32xf32>
    %69 = tpu.matmul %66, %68, %cst_26 {dimension_numbers = #tpu.dot_dimension_numbers<[1], [0], [0], [1], [0, 0, 1, 1], [], []>} : vector<32x8xbf16>, vector<8x32xbf16>, vector<32x32xf32> -> vector<32x32xf32>
    %70 = arith.addf %41, %69 : vector<32x32xf32>
    %71 = vector.extract_strided_slice %13 {offsets = [0, 16], sizes = [32, 8], strides = [1, 1]} : vector<32x96xf32> to vector<32x8xf32>
    %72 = vector.shape_cast %71 : vector<32x8xf32> to vector<4x8x8xf32>
    %73 = vector.extract_strided_slice %13 {offsets = [0, 48], sizes = [32, 8], strides = [1, 1]} : vector<32x96xf32> to vector<32x8xf32>
    %74 = vector.shape_cast %73 : vector<32x8xf32> to vector<4x8x8xf32>
    %75 = vector.extract_strided_slice %13 {offsets = [0, 80], sizes = [32, 8], strides = [1, 1]} : vector<32x96xf32> to vector<32x8xf32>
    %76 = vector.shape_cast %75 : vector<32x8xf32> to vector<4x8x8xf32>
    %77 = arith.truncf %72 : vector<4x8x8xf32> to vector<4x8x8xbf16>
    %78 = arith.truncf %74 : vector<4x8x8xf32> to vector<4x8x8xbf16>
    "tpu.trace_start"() <{level = 10 : i32, message = "bqd,bkd->bqk"}> : () -> ()
    %cst_27 = arith.constant dense<0.000000e+00> : vector<4x8x8xf32>
    %79 = tpu.matmul %77, %78, %cst_27 {dimension_numbers = #tpu.dot_dimension_numbers<[2], [2], [1], [1], [0, 0, 0, 1, 1, 1], [0], [0]>} : vector<4x8x8xbf16>, vector<4x8x8xbf16>, vector<4x8x8xf32> -> vector<4x8x8xf32>
    "tpu.trace_stop"() : () -> ()
    %80 = arith.addf %79, %7 : vector<4x8x8xf32>
    %cst_28 = arith.constant dense<0xFF800000> : vector<4x8xf32>
    %81 = vector.multi_reduction <maximumf>, %80, %cst_28 [2] : vector<4x8x8xf32> to vector<4x8xf32>
    %82 = vector.shape_cast %81 : vector<4x8xf32> to vector<4x8x1xf32>
    %83 = vector.broadcast %82 : vector<4x8x1xf32> to vector<4x8x8xf32>
    %84 = arith.subf %80, %83 : vector<4x8x8xf32>
    %85 = math.exp %84 : vector<4x8x8xf32>
    %cst_29 = arith.constant dense<0.000000e+00> : vector<4x8xf32>
    %86 = vector.multi_reduction <add>, %85, %cst_29 [2] : vector<4x8x8xf32> to vector<4x8xf32>
    %87 = vector.shape_cast %86 : vector<4x8xf32> to vector<4x8x1xf32>
    %88 = tpu.reciprocal %87 {approx = true} : vector<4x8x1xf32> -> vector<4x8x1xf32>
    %89 = vector.broadcast %88 : vector<4x8x1xf32> to vector<4x8x8xf32>
    %90 = arith.mulf %85, %89 : vector<4x8x8xf32>
    %91 = arith.truncf %90 : vector<4x8x8xf32> to vector<4x8x8xbf16>
    %92 = arith.truncf %76 : vector<4x8x8xf32> to vector<4x8x8xbf16>
    "tpu.trace_start"() <{level = 10 : i32, message = "bqk,bkd->bqd"}> : () -> ()
    %cst_30 = arith.constant dense<0.000000e+00> : vector<4x8x8xf32>
    %93 = tpu.matmul %91, %92, %cst_30 {dimension_numbers = #tpu.dot_dimension_numbers<[2], [1], [1], [2], [0, 0, 0, 1, 1, 2], [0], [0]>} : vector<4x8x8xbf16>, vector<4x8x8xbf16>, vector<4x8x8xf32> -> vector<4x8x8xf32>
    "tpu.trace_stop"() : () -> ()
    %94 = vector.shape_cast %93 : vector<4x8x8xf32> to vector<32x8xf32>
    %95 = arith.truncf %94 : vector<32x8xf32> to vector<32x8xbf16>
    %c2 = arith.constant 2 : index
    %c0_31 = arith.constant 0 : index
    %c0_32 = arith.constant 0 : index
    %96 = vector.load %arg5[%c2, %c0_31, %c0_32] : memref<4x8x32xbf16, #tpu.memory_space<vmem>>, vector<1x8x32xbf16>
    %97 = vector.shape_cast %96 : vector<1x8x32xbf16> to vector<8x32xbf16>
    %cst_33 = arith.constant dense<0.000000e+00> : vector<32x32xf32>
    %98 = tpu.matmul %95, %97, %cst_33 {dimension_numbers = #tpu.dot_dimension_numbers<[1], [0], [0], [1], [0, 0, 1, 1], [], []>} : vector<32x8xbf16>, vector<8x32xbf16>, vector<32x32xf32> -> vector<32x32xf32>
    %99 = arith.addf %70, %98 : vector<32x32xf32>
    %100 = vector.extract_strided_slice %13 {offsets = [0, 24], sizes = [32, 8], strides = [1, 1]} : vector<32x96xf32> to vector<32x8xf32>
    %101 = vector.shape_cast %100 : vector<32x8xf32> to vector<4x8x8xf32>
    %102 = vector.extract_strided_slice %13 {offsets = [0, 56], sizes = [32, 8], strides = [1, 1]} : vector<32x96xf32> to vector<32x8xf32>
    %103 = vector.shape_cast %102 : vector<32x8xf32> to vector<4x8x8xf32>
    %104 = vector.extract_strided_slice %13 {offsets = [0, 88], sizes = [32, 8], strides = [1, 1]} : vector<32x96xf32> to vector<32x8xf32>
    %105 = vector.shape_cast %104 : vector<32x8xf32> to vector<4x8x8xf32>
    %106 = arith.truncf %101 : vector<4x8x8xf32> to vector<4x8x8xbf16>
    %107 = arith.truncf %103 : vector<4x8x8xf32> to vector<4x8x8xbf16>
    "tpu.trace_start"() <{level = 10 : i32, message = "bqd,bkd->bqk"}> : () -> ()
    %cst_34 = arith.constant dense<0.000000e+00> : vector<4x8x8xf32>
    %108 = tpu.matmul %106, %107, %cst_34 {dimension_numbers = #tpu.dot_dimension_numbers<[2], [2], [1], [1], [0, 0, 0, 1, 1, 1], [0], [0]>} : vector<4x8x8xbf16>, vector<4x8x8xbf16>, vector<4x8x8xf32> -> vector<4x8x8xf32>
    "tpu.trace_stop"() : () -> ()
    %109 = arith.addf %108, %7 : vector<4x8x8xf32>
    %cst_35 = arith.constant dense<0xFF800000> : vector<4x8xf32>
    %110 = vector.multi_reduction <maximumf>, %109, %cst_35 [2] : vector<4x8x8xf32> to vector<4x8xf32>
    %111 = vector.shape_cast %110 : vector<4x8xf32> to vector<4x8x1xf32>
    %112 = vector.broadcast %111 : vector<4x8x1xf32> to vector<4x8x8xf32>
    %113 = arith.subf %109, %112 : vector<4x8x8xf32>
    %114 = math.exp %113 : vector<4x8x8xf32>
    %cst_36 = arith.constant dense<0.000000e+00> : vector<4x8xf32>
    %115 = vector.multi_reduction <add>, %114, %cst_36 [2] : vector<4x8x8xf32> to vector<4x8xf32>
    %116 = vector.shape_cast %115 : vector<4x8xf32> to vector<4x8x1xf32>
    %117 = tpu.reciprocal %116 {approx = true} : vector<4x8x1xf32> -> vector<4x8x1xf32>
    %118 = vector.broadcast %117 : vector<4x8x1xf32> to vector<4x8x8xf32>
    %119 = arith.mulf %114, %118 : vector<4x8x8xf32>
    %120 = arith.truncf %119 : vector<4x8x8xf32> to vector<4x8x8xbf16>
    %121 = arith.truncf %105 : vector<4x8x8xf32> to vector<4x8x8xbf16>
    "tpu.trace_start"() <{level = 10 : i32, message = "bqk,bkd->bqd"}> : () -> ()
    %cst_37 = arith.constant dense<0.000000e+00> : vector<4x8x8xf32>
    %122 = tpu.matmul %120, %121, %cst_37 {dimension_numbers = #tpu.dot_dimension_numbers<[2], [1], [1], [2], [0, 0, 0, 1, 1, 2], [0], [0]>} : vector<4x8x8xbf16>, vector<4x8x8xbf16>, vector<4x8x8xf32> -> vector<4x8x8xf32>
    "tpu.trace_stop"() : () -> ()
    %123 = vector.shape_cast %122 : vector<4x8x8xf32> to vector<32x8xf32>
    %124 = arith.truncf %123 : vector<32x8xf32> to vector<32x8xbf16>
    %c3 = arith.constant 3 : index
    %c0_38 = arith.constant 0 : index
    %c0_39 = arith.constant 0 : index
    %125 = vector.load %arg5[%c3, %c0_38, %c0_39] : memref<4x8x32xbf16, #tpu.memory_space<vmem>>, vector<1x8x32xbf16>
    %126 = vector.shape_cast %125 : vector<1x8x32xbf16> to vector<8x32xbf16>
    %cst_40 = arith.constant dense<0.000000e+00> : vector<32x32xf32>
    %127 = tpu.matmul %124, %126, %cst_40 {dimension_numbers = #tpu.dot_dimension_numbers<[1], [0], [0], [1], [0, 0, 1, 1], [], []>} : vector<32x8xbf16>, vector<8x32xbf16>, vector<32x32xf32> -> vector<32x32xf32>
    %128 = arith.addf %99, %127 : vector<32x32xf32>
    %c0_41 = arith.constant 0 : index
    %c0_42 = arith.constant 0 : index
    %129 = vector.load %arg6[%c0_41, %c0_42] : memref<1x32xf32, #tpu.memory_space<vmem>>, vector<1x32xf32>
    %130 = vector.broadcast %129 : vector<1x32xf32> to vector<32x32xf32>
    %131 = arith.addf %128, %130 : vector<32x32xf32>
    %132 = arith.addf %1, %131 : vector<32x32xf32>
    %cst_43 = arith.constant dense<0.000000e+00> : vector<32xf32>
    %133 = vector.multi_reduction <add>, %132, %cst_43 [1] : vector<32x32xf32> to vector<32xf32>
    %134 = vector.shape_cast %133 : vector<32xf32> to vector<32x1xf32>
    %cst_44 = arith.constant 3.200000e+01 : f32
    %135 = vector.broadcast %cst_44 : f32 to vector<32x1xf32>
    %136 = arith.divf %134, %135 : vector<32x1xf32>
    %137 = vector.broadcast %136 : vector<32x1xf32> to vector<32x32xf32>
    %138 = arith.subf %132, %137 : vector<32x32xf32>
    %139 = arith.mulf %138, %138 : vector<32x32xf32>
    %cst_45 = arith.constant dense<0.000000e+00> : vector<32xf32>
    %140 = vector.multi_reduction <add>, %139, %cst_45 [1] : vector<32x32xf32> to vector<32xf32>
    %141 = vector.shape_cast %140 : vector<32xf32> to vector<32x1xf32>
    %cst_46 = arith.constant 3.200000e+01 : f32
    %142 = vector.broadcast %cst_46 : f32 to vector<32x1xf32>
    %143 = arith.divf %141, %142 : vector<32x1xf32>
    %144 = vector.broadcast %136 : vector<32x1xf32> to vector<32x32xf32>
    %145 = arith.subf %132, %144 : vector<32x32xf32>
    %cst_47 = arith.constant 9.99999974E-6 : f32
    %146 = vector.broadcast %cst_47 : f32 to vector<32x1xf32>
    %147 = arith.addf %143, %146 : vector<32x1xf32>
    %148 = math.rsqrt %147 : vector<32x1xf32>
    %149 = vector.broadcast %148 : vector<32x1xf32> to vector<32x32xf32>
    %150 = arith.mulf %145, %149 : vector<32x32xf32>
    %c0_48 = arith.constant 0 : index
    %c0_49 = arith.constant 0 : index
    %151 = vector.load %arg11[%c0_48, %c0_49] : memref<1x32xf32, #tpu.memory_space<vmem>>, vector<1x32xf32>
    %152 = vector.broadcast %151 : vector<1x32xf32> to vector<32x32xf32>
    %153 = arith.mulf %150, %152 : vector<32x32xf32>
    %c0_50 = arith.constant 0 : index
    %c0_51 = arith.constant 0 : index
    %154 = vector.load %arg12[%c0_50, %c0_51] : memref<1x32xf32, #tpu.memory_space<vmem>>, vector<1x32xf32>
    %155 = vector.broadcast %154 : vector<1x32xf32> to vector<32x32xf32>
    %156 = arith.addf %153, %155 : vector<32x32xf32>
    %157 = arith.truncf %156 : vector<32x32xf32> to vector<32x32xbf16>
    %c0_52 = arith.constant 0 : index
    %c0_53 = arith.constant 0 : index
    %158 = vector.load %arg7[%c0_52, %c0_53] : memref<32x64xbf16, #tpu.memory_space<vmem>>, vector<32x64xbf16>
    %cst_54 = arith.constant dense<0.000000e+00> : vector<32x64xf32>
    %159 = tpu.matmul %157, %158, %cst_54 {dimension_numbers = #tpu.dot_dimension_numbers<[1], [0], [0], [1], [0, 0, 1, 1], [], []>} : vector<32x32xbf16>, vector<32x64xbf16>, vector<32x64xf32> -> vector<32x64xf32>
    %c0_55 = arith.constant 0 : index
    %c0_56 = arith.constant 0 : index
    %160 = vector.load %arg8[%c0_55, %c0_56] : memref<1x64xf32, #tpu.memory_space<vmem>>, vector<1x64xf32>
    %161 = vector.broadcast %160 : vector<1x64xf32> to vector<32x64xf32>
    %162 = arith.addf %159, %161 : vector<32x64xf32>
    %cst_57 = arith.constant 0.000000e+00 : f32
    %163 = vector.broadcast %cst_57 : f32 to vector<32x64xf32>
    %164 = arith.maximumf %162, %163 : vector<32x64xf32>
    %165 = arith.truncf %164 : vector<32x64xf32> to vector<32x64xbf16>
    %c0_58 = arith.constant 0 : index
    %c0_59 = arith.constant 0 : index
    %166 = vector.load %arg9[%c0_58, %c0_59] : memref<64x32xbf16, #tpu.memory_space<vmem>>, vector<64x32xbf16>
    %cst_60 = arith.constant dense<0.000000e+00> : vector<32x32xf32>
    %167 = tpu.matmul %165, %166, %cst_60 {dimension_numbers = #tpu.dot_dimension_numbers<[1], [0], [0], [1], [0, 0, 1, 1], [], []>} : vector<32x64xbf16>, vector<64x32xbf16>, vector<32x32xf32> -> vector<32x32xf32>
    %c0_61 = arith.constant 0 : index
    %c0_62 = arith.constant 0 : index
    %168 = vector.load %arg10[%c0_61, %c0_62] : memref<1x32xf32, #tpu.memory_space<vmem>>, vector<1x32xf32>
    %169 = vector.broadcast %168 : vector<1x32xf32> to vector<32x32xf32>
    %170 = arith.addf %167, %169 : vector<32x32xf32>
    %171 = arith.addf %156, %170 : vector<32x32xf32>
    %cst_63 = arith.constant dense<0.000000e+00> : vector<32xf32>
    %172 = vector.multi_reduction <add>, %171, %cst_63 [1] : vector<32x32xf32> to vector<32xf32>
    %173 = vector.shape_cast %172 : vector<32xf32> to vector<32x1xf32>
    %cst_64 = arith.constant 3.200000e+01 : f32
    %174 = vector.broadcast %cst_64 : f32 to vector<32x1xf32>
    %175 = arith.divf %173, %174 : vector<32x1xf32>
    %176 = vector.broadcast %175 : vector<32x1xf32> to vector<32x32xf32>
    %177 = arith.subf %171, %176 : vector<32x32xf32>
    %178 = arith.mulf %177, %177 : vector<32x32xf32>
    %cst_65 = arith.constant dense<0.000000e+00> : vector<32xf32>
    %179 = vector.multi_reduction <add>, %178, %cst_65 [1] : vector<32x32xf32> to vector<32xf32>
    %180 = vector.shape_cast %179 : vector<32xf32> to vector<32x1xf32>
    %cst_66 = arith.constant 3.200000e+01 : f32
    %181 = vector.broadcast %cst_66 : f32 to vector<32x1xf32>
    %182 = arith.divf %180, %181 : vector<32x1xf32>
    %183 = vector.broadcast %175 : vector<32x1xf32> to vector<32x32xf32>
    %184 = arith.subf %171, %183 : vector<32x32xf32>
    %cst_67 = arith.constant 9.99999974E-6 : f32
    %185 = vector.broadcast %cst_67 : f32 to vector<32x1xf32>
    %186 = arith.addf %182, %185 : vector<32x1xf32>
    %187 = math.rsqrt %186 : vector<32x1xf32>
    %188 = vector.broadcast %187 : vector<32x1xf32> to vector<32x32xf32>
    %189 = arith.mulf %184, %188 : vector<32x32xf32>
    %c0_68 = arith.constant 0 : index
    %c0_69 = arith.constant 0 : index
    %190 = vector.load %arg13[%c0_68, %c0_69] : memref<1x32xf32, #tpu.memory_space<vmem>>, vector<1x32xf32>
    %191 = vector.broadcast %190 : vector<1x32xf32> to vector<32x32xf32>
    %192 = arith.mulf %189, %191 : vector<32x32xf32>
    %c0_70 = arith.constant 0 : index
    %c0_71 = arith.constant 0 : index
    %193 = vector.load %arg14[%c0_70, %c0_71] : memref<1x32xf32, #tpu.memory_space<vmem>>, vector<1x32xf32>
    %194 = vector.broadcast %193 : vector<1x32xf32> to vector<32x32xf32>
    %195 = arith.addf %192, %194 : vector<32x32xf32>
    %196 = vector.shape_cast %195 : vector<32x32xf32> to vector<4x8x32xf32>
    %c0_72 = arith.constant 0 : index
    %c0_73 = arith.constant 0 : index
    %c0_74 = arith.constant 0 : index
    %197 = vector.load %arg15[%c0_72, %c0_73, %c0_74] : memref<4x8x32xf32, #tpu.memory_space<vmem>>, vector<4x8x32xf32>
    tpu.vector_store %arg15[%c0_72, %c0_73, %c0_74], %196 {strides = array<i32>} : memref<4x8x32xf32, #tpu.memory_space<vmem>>, vector<4x8x32xf32>,
    return
  }
  func.func @transform_0(%arg0: i32) -> (i32, i32, i32) {
    %c0_i32 = arith.constant 0 : i32
    %c0_i32_0 = arith.constant 0 : i32
    %c0_i32_1 = arith.constant 0 : i32
    return %arg0, %c0_i32, %c0_i32_0 : i32, i32, i32
  }
  func.func @transform_1(%arg0: i32) -> (i32, i32, i32) {
    %c0_i32 = arith.constant 0 : i32
    %c0_i32_0 = arith.constant 0 : i32
    %c0_i32_1 = arith.constant 0 : i32
    return %arg0, %c0_i32, %c0_i32_0 : i32, i32, i32
  }
  func.func @transform_2(%arg0: i32) -> (i32, i32) {
    %c0_i32 = arith.constant 0 : i32
    %c0_i32_0 = arith.constant 0 : i32
    %c0_i32_1 = arith.constant 0 : i32
    return %c0_i32, %c0_i32_0 : i32, i32
  }
  func.func @transform_3(%arg0: i32) -> (i32, i32) {
    %c0_i32 = arith.constant 0 : i32
    %c0_i32_0 = arith.constant 0 : i32
    %c0_i32_1 = arith.constant 0 : i32
    return %c0_i32, %c0_i32_0 : i32, i32
  }
  func.func @transform_4(%arg0: i32) -> (i32, i32, i32) {
    %c0_i32 = arith.constant 0 : i32
    %c0_i32_0 = arith.constant 0 : i32
    %c0_i32_1 = arith.constant 0 : i32
    %c0_i32_2 = arith.constant 0 : i32
    return %c0_i32, %c0_i32_0, %c0_i32_1 : i32, i32, i32
  }
  func.func @transform_5(%arg0: i32) -> (i32, i32) {
    %c0_i32 = arith.constant 0 : i32
    %c0_i32_0 = arith.constant 0 : i32
    %c0_i32_1 = arith.constant 0 : i32
    return %c0_i32, %c0_i32_0 : i32, i32
  }
  func.func @transform_6(%arg0: i32) -> (i32, i32) {
    %c0_i32 = arith.constant 0 : i32
    %c0_i32_0 = arith.constant 0 : i32
    %c0_i32_1 = arith.constant 0 : i32
    return %c0_i32, %c0_i32_0 : i32, i32
  }
  func.func @transform_7(%arg0: i32) -> (i32, i32) {
    %c0_i32 = arith.constant 0 : i32
    %c0_i32_0 = arith.constant 0 : i32
    %c0_i32_1 = arith.constant 0 : i32
    return %c0_i32, %c0_i32_0 : i32, i32
  }
  func.func @transform_8(%arg0: i32) -> (i32, i32) {
    %c0_i32 = arith.constant 0 : i32
    %c0_i32_0 = arith.constant 0 : i32
    %c0_i32_1 = arith.constant 0 : i32
    return %c0_i32, %c0_i32_0 : i32, i32
  }
  func.func @transform_9(%arg0: i32) -> (i32, i32) {
    %c0_i32 = arith.constant 0 : i32
    %c0_i32_0 = arith.constant 0 : i32
    %c0_i32_1 = arith.constant 0 : i32
    return %c0_i32, %c0_i32_0 : i32, i32
  }
  func.func @transform_10(%arg0: i32) -> (i32, i32) {
    %c0_i32 = arith.constant 0 : i32
    %c0_i32_0 = arith.constant 0 : i32
    %c0_i32_1 = arith.constant 0 : i32
    return %c0_i32, %c0_i32_0 : i32, i32
  }
  func.func @transform_11(%arg0: i32) -> (i32, i32) {
    %c0_i32 = arith.constant 0 : i32
    %c0_i32_0 = arith.constant 0 : i32
    %c0_i32_1 = arith.constant 0 : i32
    return %c0_i32, %c0_i32_0 : i32, i32
  }
  func.func @transform_12(%arg0: i32) -> (i32, i32) {
    %c0_i32 = arith.constant 0 : i32
    %c0_i32_0 = arith.constant 0 : i32
    %c0_i32_1 = arith.constant 0 : i32
    return %c0_i32, %c0_i32_0 : i32, i32
  }
  func.func @transform_13(%arg0: i32) -> (i32, i32) {
    %c0_i32 = arith.constant 0 : i32
    %c0_i32_0 = arith.constant 0 : i32
    %c0_i32_1 = arith.constant 0 : i32
    return %c0_i32, %c0_i32_0 : i32, i32
  }
  func.func @transform_14(%arg0: i32) -> (i32, i32, i32) {
    %c0_i32 = arith.constant 0 : i32
    %c0_i32_0 = arith.constant 0 : i32
    %c0_i32_1 = arith.constant 0 : i32
    return %arg0, %c0_i32, %c0_i32_0 : i32, i32, i32
  }
}

</mosaic_0001>

<llo_original>
// kernel: tpu_custom_call.1
$region0: #{tpu_custom_call.1}
  #allocation0 [shape = 'u32[]', space=smem, size = 0x4, offset = 0x4, fixed_abs, tag = 'smem constant byte address 0x4 - core index']
  #allocation1 [shape = 'u32[72,128]{1,0:T(1,128)}', space=vmem, size = 0x9000, scoped, tag = 'internal scratch']
  %s0 = inlined_call_operand.vmem [shape: f32[4,8,32], index: 0, kind: input, shape index: {}]
  %s1 = inlined_call_operand.hbm [shape: f32[4,8,8], index: 1, kind: input, shape index: {}]
  %s2 = inlined_call_operand.vmem [shape: bf16[32,96], index: 2, kind: input, shape index: {}]
  %s3 = inlined_call_operand.vmem [shape: f32[1,96], index: 3, kind: input, shape index: {}]
  %s4 = inlined_call_operand.hbm [shape: bf16[4,8,32], index: 4, kind: input, shape index: {}]
  %s5 = inlined_call_operand.vmem [shape: f32[1,32], index: 5, kind: input, shape index: {}]
  %s6 = inlined_call_operand.hbm [shape: bf16[32,64], index: 6, kind: input, shape index: {}]
  %s7 = inlined_call_operand.vmem [shape: f32[1,64], index: 7, kind: input, shape index: {}]
  %s8 = inlined_call_operand.vmem [shape: bf16[64,32], index: 8, kind: input, shape index: {}]
  %s9 = inlined_call_operand.vmem [shape: f32[1,32], index: 9, kind: input, shape index: {}]
  %s10 = inlined_call_operand.vmem [shape: f32[1,32], index: 10, kind: input, shape index: {}]
  %s11 = inlined_call_operand.vmem [shape: f32[1,32], index: 11, kind: input, shape index: {}]
  %s12 = inlined_call_operand.vmem [shape: f32[1,32], index: 12, kind: input, shape index: {}]
  %s13 = inlined_call_operand.vmem [shape: f32[1,32], index: 13, kind: input, shape index: {}]
  %s14 = inlined_call_operand.hbm [shape: f32[4,8,32], index: 14, kind: output, shape index: {}]
  %s15 = sld [smem:[#allocation0]]
  $region78: #{tpu_custom_call.1} parent=0
    _
  %s17 = ssub.s32 1, %s15
  %s18 = scalar_select 0, %s17, %s15
  $region1: #{tpu_custom_call.1} parent=0
    #allocation2 [shape = 'u8[16384]{0}', space=vmem, size = 0x4000, scoped, tag = 'input window, operand 1, single buffered']
    #allocation3 [shape = 's32[1]{0}', space=sflag, size = 0x4, scoped, tag = 'scoped memory for tpu_custom_call.1']
    #allocation4 [shape = 's32[1]{0}', space=sflag, size = 0x4, scoped, tag = 'scoped memory for tpu_custom_call.1']
    #allocation5 [shape = 'u8[8192]{0}', space=vmem, size = 0x2000, scoped, tag = 'input window, operand 4, single buffered']
    #allocation6 [shape = 's32[1]{0}', space=sflag, size = 0x4, scoped, tag = 'scoped memory for tpu_custom_call.1']
    #allocation7 [shape = 'u8[8192]{0}', space=vmem, size = 0x2000, scoped, tag = 'input window, operand 6, single buffered']
    #allocation8 [shape = 'u8[16384]{0}', space=vmem, size = 0x4000, scoped, tag = 'output window, operand 0, single buffered']
    %19 = vsyncpa [#allocation3], 0
    %20 = vsyncpa [#allocation6], 0
    %21 = vsyncpa [#allocation4], 0
    // Predicated region
    $region2: #{tpu_custom_call.1} parent=1 // pred_check
      _
    $region3: #{tpu_custom_call.1} parent=1 // pred_check_branch
      %23 = sbr.rel (0) target = $region5
    $region4: #{tpu_custom_call.1} parent=1 // pred_region
      _
    $region5: #{tpu_custom_call.1} parent=1 // pred_fallthru
      _
    // Predicated region
    $region6: #{tpu_custom_call.1} parent=1 // pred_check
      _
    $region7: #{tpu_custom_call.1} parent=1 // pred_check_branch
      %25 = sbr.rel (0) target = $region9
    $region8: #{tpu_custom_call.1} parent=1 // pred_region
      %27 = vsyncadd [#allocation3], 0
      %s28 = sshll.u32 %s1, 4
      %s29 = int_to_ptr.hbm [resolvable:$true] %s28
      %s30 = sshll.u32 [#allocation2], 4
      %s31 = int_to_ptr.vmem [resolvable:$true] %s30
      %36 = dma.hbm_to_vmem [thread:$0]  %s29, 512, %s31, [#allocation3], 128, 128, 8
    $region9: #{tpu_custom_call.1} parent=1 // pred_fallthru
      _
    // Predicated region
    $region10: #{tpu_custom_call.1} parent=1 // pred_check
      _
    $region11: #{tpu_custom_call.1} parent=1 // pred_check_branch
      %38 = sbr.rel (0) target = $region13
    $region12: #{tpu_custom_call.1} parent=1 // pred_region
      _
    $region13: #{tpu_custom_call.1} parent=1 // pred_fallthru
      _
    // Predicated region
    $region14: #{tpu_custom_call.1} parent=1 // pred_check
      _
    $region15: #{tpu_custom_call.1} parent=1 // pred_check_branch
      %40 = sbr.rel (0) target = $region17
    $region16: #{tpu_custom_call.1} parent=1 // pred_region
      _
    $region17: #{tpu_custom_call.1} parent=1 // pred_fallthru
      _
    // Predicated region
    $region18: #{tpu_custom_call.1} parent=1 // pred_check
      _
    $region19: #{tpu_custom_call.1} parent=1 // pred_check_branch
      %42 = sbr.rel (0) target = $region21
    $region20: #{tpu_custom_call.1} parent=1 // pred_region
      %44 = vsyncadd [#allocation6], 0
      %s45 = sshll.u32 %s4, 4
      %s46 = int_to_ptr.hbm [resolvable:$true] %s45
      %s47 = sshll.u32 [#allocation5], 4
      %s48 = int_to_ptr.vmem [resolvable:$true] %s47
      %53 = dma.hbm_to_vmem [thread:$0]  %s46, 256, %s48, [#allocation6], 64, 64, 4
    $region21: #{tpu_custom_call.1} parent=1 // pred_fallthru
      _
    // Predicated region
    $region22: #{tpu_custom_call.1} parent=1 // pred_check
      _
    $region23: #{tpu_custom_call.1} parent=1 // pred_check_branch
      %55 = sbr.rel (0) target = $region25
    $region24: #{tpu_custom_call.1} parent=1 // pred_region
      _
    $region25: #{tpu_custom_call.1} parent=1 // pred_fallthru
      _
    // Predicated region
    $region26: #{tpu_custom_call.1} parent=1 // pred_check
      _
    $region27: #{tpu_custom_call.1} parent=1 // pred_check_branch
      %57 = sbr.rel (0) target = $region29
    $region28: #{tpu_custom_call.1} parent=1 // pred_region
      %59 = vsyncadd [#allocation6], 0
      %s60 = sshll.u32 %s6, 4
      %s61 = int_to_ptr.hbm [resolvable:$true] %s60
      %s62 = sshll.u32 [#allocation7], 4
      %s63 = int_to_ptr.vmem [resolvable:$true] %s62
      %68 = dma.hbm_to_vmem [thread:$0]  %s61, 256, %s63, [#allocation6], 64, 64, 4
    $region29: #{tpu_custom_call.1} parent=1 // pred_fallthru
      _
    // Predicated region
    $region30: #{tpu_custom_call.1} parent=1 // pred_check
      _
    $region31: #{tpu_custom_call.1} parent=1 // pred_check_branch
      %70 = sbr.rel (0) target = $region33
    $region32: #{tpu_custom_call.1} parent=1 // pred_region
      _
    $region33: #{tpu_custom_call.1} parent=1 // pred_fallthru
      _
    // Predicated region
    $region34: #{tpu_custom_call.1} parent=1 // pred_check
      _
    $region35: #{tpu_custom_call.1} parent=1 // pred_check_branch
      %72 = sbr.rel (0) target = $region37
    $region36: #{tpu_custom_call.1} parent=1 // pred_region
      _
    $region37: #{tpu_custom_call.1} parent=1 // pred_fallthru
      _
    // Predicated region
    $region38: #{tpu_custom_call.1} parent=1 // pred_check
      _
    $region39: #{tpu_custom_call.1} parent=1 // pred_check_branch
      %74 = sbr.rel (0) target = $region41
    $region40: #{tpu_custom_call.1} parent=1 // pred_region
      _
    $region41: #{tpu_custom_call.1} parent=1 // pred_fallthru
      _
    // Predicated region
    $region42: #{tpu_custom_call.1} parent=1 // pred_check
      _
    $region43: #{tpu_custom_call.1} parent=1 // pred_check_branch
      %76 = sbr.rel (0) target = $region45
    $region44: #{tpu_custom_call.1} parent=1 // pred_region
      _
    $region45: #{tpu_custom_call.1} parent=1 // pred_fallthru
      _
    // Predicated region
    $region46: #{tpu_custom_call.1} parent=1 // pred_check
      _
    $region47: #{tpu_custom_call.1} parent=1 // pred_check_branch
      %78 = sbr.rel (0) target = $region49
    $region48: #{tpu_custom_call.1} parent=1 // pred_region
      _
    $region49: #{tpu_custom_call.1} parent=1 // pred_fallthru
      _
    // Predicated region
    $region50: #{tpu_custom_call.1} parent=1 // pred_check
      _
    $region51: #{tpu_custom_call.1} parent=1 // pred_check_branch
      %80 = sbr.rel (0) target = $region53
    $region52: #{tpu_custom_call.1} parent=1 // pred_region
      _
    $region53: #{tpu_custom_call.1} parent=1 // pred_fallthru
      _
    // Predicated region
    $region54: #{tpu_custom_call.1} parent=1 // pred_check
      _
    $region55: #{tpu_custom_call.1} parent=1 // pred_check_branch
      %82 = sbr.rel (0) target = $region57
    $region56: #{tpu_custom_call.1} parent=1 // pred_region
      _
    $region57: #{tpu_custom_call.1} parent=1 // pred_fallthru
      _
    // Predicated region
    $region58: #{tpu_custom_call.1} parent=1 // pred_check
      _
    $region59: #{tpu_custom_call.1} parent=1 // pred_check_branch
      %84 = sbr.rel (0) target = $region61
    $region60: #{tpu_custom_call.1} parent=1 // pred_region
      %86 = dma.done [#allocation3], 512
    $region61: #{tpu_custom_call.1} parent=1 // pred_fallthru
      _
    // Predicated region
    $region62: #{tpu_custom_call.1} parent=1 // pred_check
      _
    $region63: #{tpu_custom_call.1} parent=1 // pred_check_branch
      %88 = sbr.rel (0) target = $region65
    $region64: #{tpu_custom_call.1} parent=1 // pred_region
      %90 = dma.done [#allocation6], 256
    $region65: #{tpu_custom_call.1} parent=1 // pred_fallthru
      _
    // Predicated region
    $region66: #{tpu_custom_call.1} parent=1 // pred_check
      _
    $region67: #{tpu_custom_call.1} parent=1 // pred_check_branch
      %92 = sbr.rel (0) target = $region69
    $region68: #{tpu_custom_call.1} parent=1 // pred_region
      %94 = dma.done [#allocation6], 256
    $region69: #{tpu_custom_call.1} parent=1 // pred_fallthru
      _
    %v96 = vld [vmem:[%s0] sm:$0xff]
    %v97 = vld [vmem:[%s0 + $0x8] sm:$0xff]
    %v98 = vld [vmem:[%s0 + $0x10] sm:$0xff]
    %v99 = vld [vmem:[%s0 + $0x18] sm:$0xff]
    %v100 = vld [vmem:[#allocation2] sm:$0xff]
    %v101 = vld [vmem:[#allocation2 + $0x8] sm:$0xff]
    %v102 = vld [vmem:[#allocation2 + $0x10] sm:$0xff]
    %v103 = vld [vmem:[#allocation2 + $0x18] sm:$0xff]
    %vm104 = vcmp.eq.f32.partialorder %v100, 0.0
    %vm105 = vcmp.eq.f32.partialorder %v101, 0.0
    %vm106 = vcmp.eq.f32.partialorder %v102, 0.0
    %vm107 = vcmp.eq.f32.partialorder %v103, 0.0
    %v108 = vsel %vm104, -1e+09, 0.0
    %v109 = vsel %vm105, -1e+09, 0.0
    %v110 = vsel %vm106, -1e+09, 0.0
    %v111 = vsel %vm107, -1e+09, 0.0
    %v112 = vpack.c.bf16 %v97, %v96
    %v113 = vpack.c.bf16 %v99, %v98
    %v114 = vld [vmem:[%s2] sm:$0xf]
    %v115 = vld [vmem:[%s2 + $0x4] sm:$0xf]
    %v116 = vld [vmem:[%s2 + $0x8] sm:$0xf]
    %v117 = vld [vmem:[%s2 + $0xc] sm:$0xf]
    %v118 = vld [vmem:[%s3] sm:$0x1]
    %v120 = vperm.slane %v118, 0
    %v126 = vunpack.c.l.b16 %v114
    %v127 = vunpack.c.l.b16 %v115
    %v128 = vunpack.c.l.b16 %v116
    %v129 = vunpack.c.l.b16 %v117
    %v130 = vpack.c.b16 %v127, %v126
    %v131 = vpack.c.b16 %v129, %v128
    %vm134 = vcmask 261120
    %v136 = vsel %vm134, %v112, 0
    %v139 = vsel %vm134, %v113, 0
    %141 = vmatpush.bf16.msra.mxu0 0
    %142 = vmatpush.bf16.msra.mxu0 0
    %143 = vmatpush.bf16.msra.mxu0 0
    %144 = vmatpush.bf16.msra.mxu0 0
    %145 = vmatpush.bf16.msra.mxu0 0
    %146 = vmatpush.bf16.msra.mxu0 0
    %147 = vmatpush.bf16.msra.mxu0 %v131
    %148 = vmatpush.bf16.msra.mxu0 %v130
    %149 = vmatmul.bf16.gmra.mxu0 %v136
    %v150 = vpop.f32.mrf.mxu0
    %v151 = vadd.f32 %v120, %v150
    %v152 = vpop.f32.mrf.mxu0
    %v153 = vadd.f32 %v120, %v152
    %154 = vmatmul.bf16.gmra.mxu0 %v139
    %v155 = vpop.f32.mrf.mxu0
    %v156 = vadd.f32 %v120, %v155
    %v157 = vpop.f32.mrf.mxu0
    %v158 = vadd.f32 %v120, %v157
    %159 = vdwg.mxu0
    %v160 = vpack.c.bf16 %v151, %v151
    %v161 = vpack.c.bf16 %v153, %v153
    %v162 = vpack.c.bf16 %v156, %v156
    %v163 = vpack.c.bf16 %v158, %v158
    %v165 = vunpack.c.l.b16 %v160
    %v166 = vpack.c.b16 %v165, %v165
    %167 = vrot.lane.b32.xlu0 %v166, 96
    %v168 = vpop.permute.xlu0 %167
    %vm169 = vcmask 64512
    %v171 = vsel %vm169, %v160, 0
    %v174 = vsel %vm169, %v168, 0
    %176 = vmatpush.bf16.xpose.msra.mxu0 0
    %177 = vmatpush.bf16.xpose.msra.mxu0 0
    %178 = vmatpush.bf16.xpose.msra.mxu0 0
    %179 = vmatpush.bf16.xpose.msra.mxu0 0
    %180 = vmatpush.bf16.xpose.msra.mxu0 0
    %181 = vmatpush.bf16.xpose.msra.mxu0 0
    %182 = vmatpush.bf16.xpose.msra.mxu0 0
    %183 = vmatpush.bf16.xpose.msra.mxu0 %v174
    %184 = vmatmul.bf16.gmra.mxu0 %v171
    %v185 = vpop.f32.mrf.mxu0
    %v186 = vadd.f32 %v108, %v185
    %v187 = vpop.f32.mrf.mxu0
    %188 = vdwg.mxu0
    %v190 = vunpack.c.l.b16 %v161
    %v191 = vpack.c.b16 %v190, %v190
    %192 = vrot.lane.b32.xlu0 %v191, 96
    %v193 = vpop.permute.xlu0 %192
    %v195 = vsel %vm169, %v161, 0
    %v198 = vsel %vm169, %v193, 0
    %200 = vmatpush.bf16.xpose.msra.mxu0 0
    %201 = vmatpush.bf16.xpose.msra.mxu0 0
    %202 = vmatpush.bf16.xpose.msra.mxu0 0
    %203 = vmatpush.bf16.xpose.msra.mxu0 0
    %204 = vmatpush.bf16.xpose.msra.mxu0 0
    %205 = vmatpush.bf16.xpose.msra.mxu0 0
    %206 = vmatpush.bf16.xpose.msra.mxu0 0
    %207 = vmatpush.bf16.xpose.msra.mxu0 %v198
    %208 = vmatmul.bf16.gmra.mxu0 %v195
    %v209 = vpop.f32.mrf.mxu0
    %v210 = vadd.f32 %v109, %v209
    %v211 = vpop.f32.mrf.mxu0
    %212 = vdwg.mxu0
    %v214 = vunpack.c.l.b16 %v162
    %v215 = vpack.c.b16 %v214, %v214
    %216 = vrot.lane.b32.xlu0 %v215, 96
    %v217 = vpop.permute.xlu0 %216
    %v219 = vsel %vm169, %v162, 0
    %v222 = vsel %vm169, %v217, 0
    %224 = vmatpush.bf16.xpose.msra.mxu0 0
    %225 = vmatpush.bf16.xpose.msra.mxu0 0
    %226 = vmatpush.bf16.xpose.msra.mxu0 0
    %227 = vmatpush.bf16.xpose.msra.mxu0 0
    %228 = vmatpush.bf16.xpose.msra.mxu0 0
    %229 = vmatpush.bf16.xpose.msra.mxu0 0
    %230 = vmatpush.bf16.xpose.msra.mxu0 0
    %231 = vmatpush.bf16.xpose.msra.mxu0 %v222
    %232 = vmatmul.bf16.gmra.mxu0 %v219
    %v233 = vpop.f32.mrf.mxu0
    %v234 = vadd.f32 %v110, %v233
    %v235 = vpop.f32.mrf.mxu0
    %236 = vdwg.mxu0
    %v238 = vunpack.c.l.b16 %v163
    %v239 = vpack.c.b16 %v238, %v238
    %240 = vrot.lane.b32.xlu0 %v239, 96
    %v241 = vpop.permute.xlu0 %240
    %v243 = vsel %vm169, %v163, 0
    %v246 = vsel %vm169, %v241, 0
    %248 = vmatpush.bf16.xpose.msra.mxu0 0
    %249 = vmatpush.bf16.xpose.msra.mxu0 0
    %250 = vmatpush.bf16.xpose.msra.mxu0 0
    %251 = vmatpush.bf16.xpose.msra.mxu0 0
    %252 = vmatpush.bf16.xpose.msra.mxu0 0
    %253 = vmatpush.bf16.xpose.msra.mxu0 0
    %254 = vmatpush.bf16.xpose.msra.mxu0 0
    %255 = vmatpush.bf16.xpose.msra.mxu0 %v246
    %256 = vmatmul.bf16.gmra.mxu0 %v243
    %v257 = vpop.f32.mrf.mxu0
    %v258 = vadd.f32 %v111, %v257
    %v259 = vpop.f32.mrf.mxu0
    %260 = vdwg.mxu0
    %v261 = vsel %vm169, %v186, -inf
    %262 = vmax.xlane.f32.xlu0 %v261
    %v263 = vpop.xlane.xlu0 %262
    %v264 = vsel %vm169, %v210, -inf
    %265 = vmax.xlane.f32.xlu0 %v264
    %v266 = vpop.xlane.xlu0 %265
    %v267 = vsel %vm169, %v234, -inf
    %268 = vmax.xlane.f32.xlu0 %v267
    %v269 = vpop.xlane.xlu0 %268
    %v270 = vsel %vm169, %v258, -inf
    %271 = vmax.xlane.f32.xlu0 %v270
    %v272 = vpop.xlane.xlu0 %271
    %v273 = vsub.f32 %v186, %v263
    %v274 = vsub.f32 %v210, %v266
    %v275 = vsub.f32 %v234, %v269
    %v276 = vsub.f32 %v258, %v272
    %v277 = vmul.f32 %v273, 1.442695
    %v278 = vpow.pop %v277
    %v279 = vmul.f32 %v274, 1.442695
    %v280 = vpow.pop %v279
    %v281 = vmul.f32 %v275, 1.442695
    %v282 = vpow.pop %v281
    %v283 = vmul.f32 %v276, 1.442695
    %v284 = vpow.pop %v283
    %v285 = vsel %vm169, %v278, 0.0
    %286 = vadd.xlane.f32.xlu0 %v285
    %v287 = vpop.xlane.xlu0 %286
    %v288 = vsel %vm169, %v280, 0.0
    %289 = vadd.xlane.f32.xlu0 %v288
    %v290 = vpop.xlane.xlu0 %289
    %v291 = vsel %vm169, %v282, 0.0
    %292 = vadd.xlane.f32.xlu0 %v291
    %v293 = vpop.xlane.xlu0 %292
    %v294 = vsel %vm169, %v284, 0.0
    %295 = vadd.xlane.f32.xlu0 %v294
    %v296 = vpop.xlane.xlu0 %295
    %v297 = vrcp.pop %v287
    %v298 = vrcp.pop %v290
    %v299 = vrcp.pop %v293
    %v300 = vrcp.pop %v296
    %v301 = vmul.f32 %v278, %v297
    %v302 = vmul.f32 %v280, %v298
    %v303 = vmul.f32 %v282, %v299
    %v304 = vmul.f32 %v284, %v300
    %v305 = vpack.c.bf16 %v301, %v301
    %v306 = vpack.c.bf16 %v302, %v302
    %v307 = vpack.c.bf16 %v303, %v303
    %v308 = vpack.c.bf16 %v304, %v304
    %309 = vrot.lane.b32.xlu0 %v166, 64
    %v310 = vpop.permute.xlu0 %309
    %v312 = vsel %vm169, %v305, 0
    %vm314 = vcmask 1043456
    %v316 = vsel %vm314, %v310, 0
    %318 = vmatpush.bf16.msra.mxu0 0
    %319 = vmatpush.bf16.msra.mxu0 0
    %320 = vmatpush.bf16.msra.mxu0 0
    %321 = vmatpush.bf16.msra.mxu0 0
    %322 = vmatpush.bf16.msra.mxu0 0
    %323 = vmatpush.bf16.msra.mxu0 0
    %324 = vmatpush.bf16.msra.mxu0 0
    %325 = vmatpush.bf16.msra.mxu0 %v316
    %326 = vmatmul.bf16.gmra.mxu0 %v312
    %v327 = vpop.f32.mrf.mxu0
    %v328 = vadd.f32 0.0, %v327
    %v329 = vpop.f32.mrf.mxu0
    %330 = vdwg.mxu0
    %331 = vrot.lane.b32.xlu0 %v191, 64
    %v332 = vpop.permute.xlu0 %331
    %v334 = vsel %vm169, %v306, 0
    %v337 = vsel %vm314, %v332, 0
    %339 = vmatpush.bf16.msra.mxu0 0
    %340 = vmatpush.bf16.msra.mxu0 0
    %341 = vmatpush.bf16.msra.mxu0 0
    %342 = vmatpush.bf16.msra.mxu0 0
    %343 = vmatpush.bf16.msra.mxu0 0
    %344 = vmatpush.bf16.msra.mxu0 0
    %345 = vmatpush.bf16.msra.mxu0 0
    %346 = vmatpush.bf16.msra.mxu0 %v337
    %347 = vmatmul.bf16.gmra.mxu0 %v334
    %v348 = vpop.f32.mrf.mxu0
    %v349 = vadd.f32 0.0, %v348
    %v350 = vpop.f32.mrf.mxu0
    %351 = vdwg.mxu0
    %352 = vrot.lane.b32.xlu0 %v215, 64
    %v353 = vpop.permute.xlu0 %352
    %v355 = vsel %vm169, %v307, 0
    %v358 = vsel %vm314, %v353, 0
    %360 = vmatpush.bf16.msra.mxu0 0
    %361 = vmatpush.bf16.msra.mxu0 0
    %362 = vmatpush.bf16.msra.mxu0 0
    %363 = vmatpush.bf16.msra.mxu0 0
    %364 = vmatpush.bf16.msra.mxu0 0
    %365 = vmatpush.bf16.msra.mxu0 0
    %366 = vmatpush.bf16.msra.mxu0 0
    %367 = vmatpush.bf16.msra.mxu0 %v358
    %368 = vmatmul.bf16.gmra.mxu0 %v355
    %v369 = vpop.f32.mrf.mxu0
    %v370 = vadd.f32 0.0, %v369
    %v371 = vpop.f32.mrf.mxu0
    %372 = vdwg.mxu0
    %373 = vrot.lane.b32.xlu0 %v239, 64
    %v374 = vpop.permute.xlu0 %373
    %v376 = vsel %vm169, %v308, 0
    %v379 = vsel %vm314, %v374, 0
    %381 = vmatpush.bf16.msra.mxu0 0
    %382 = vmatpush.bf16.msra.mxu0 0
    %383 = vmatpush.bf16.msra.mxu0 0
    %384 = vmatpush.bf16.msra.mxu0 0
    %385 = vmatpush.bf16.msra.mxu0 0
    %386 = vmatpush.bf16.msra.mxu0 0
    %387 = vmatpush.bf16.msra.mxu0 0
    %388 = vmatpush.bf16.msra.mxu0 %v379
    %389 = vmatmul.bf16.gmra.mxu0 %v376
    %v390 = vpop.f32.mrf.mxu0
    %v391 = vadd.f32 0.0, %v390
    %v392 = vpop.f32.mrf.mxu0
    %393 = vdwg.mxu0
    %v394 = vpack.c.bf16 %v349, %v328
    %v395 = vpack.c.bf16 %v391, %v370
    %v396 = vld [vmem:[#allocation5] sm:$0xf]
    %397 = vrot.lane.b32.xlu0 %v166, 120
    %v398 = vpop.permute.xlu0 %397
    %399 = vrot.lane.b32.xlu0 %v166, 88
    %v400 = vpop.permute.xlu0 %399
    %v402 = vsel %vm169, %v398, 0
    %v405 = vsel %vm169, %v400, 0
    %407 = vmatpush.bf16.xpose.msra.mxu0 0
    %408 = vmatpush.bf16.xpose.msra.mxu0 0
    %409 = vmatpush.bf16.xpose.msra.mxu0 0
    %410 = vmatpush.bf16.xpose.msra.mxu0 0
    %411 = vmatpush.bf16.xpose.msra.mxu0 0
    %412 = vmatpush.bf16.xpose.msra.mxu0 0
    %413 = vmatpush.bf16.xpose.msra.mxu0 0
    %414 = vmatpush.bf16.xpose.msra.mxu0 %v405
    %415 = vmatmul.bf16.gmra.mxu0 %v402
    %v416 = vpop.f32.mrf.mxu0
    %v417 = vadd.f32 %v108, %v416
    %v418 = vpop.f32.mrf.mxu0
    %419 = vdwg.mxu0
    %420 = vrot.lane.b32.xlu0 %v191, 120
    %v421 = vpop.permute.xlu0 %420
    %422 = vrot.lane.b32.xlu0 %v191, 88
    %v423 = vpop.permute.xlu0 %422
    %v425 = vsel %vm169, %v421, 0
    %v428 = vsel %vm169, %v423, 0
    %430 = vmatpush.bf16.xpose.msra.mxu0 0
    %431 = vmatpush.bf16.xpose.msra.mxu0 0
    %432 = vmatpush.bf16.xpose.msra.mxu0 0
    %433 = vmatpush.bf16.xpose.msra.mxu0 0
    %434 = vmatpush.bf16.xpose.msra.mxu0 0
    %435 = vmatpush.bf16.xpose.msra.mxu0 0
    %436 = vmatpush.bf16.xpose.msra.mxu0 0
    %437 = vmatpush.bf16.xpose.msra.mxu0 %v428
    %438 = vmatmul.bf16.gmra.mxu0 %v425
    %v439 = vpop.f32.mrf.mxu0
    %v440 = vadd.f32 %v109, %v439
    %v441 = vpop.f32.mrf.mxu0
    %442 = vdwg.mxu0
    %443 = vrot.lane.b32.xlu0 %v215, 120
    %v444 = vpop.permute.xlu0 %443
    %445 = vrot.lane.b32.xlu0 %v215, 88
    %v446 = vpop.permute.xlu0 %445
    %v448 = vsel %vm169, %v444, 0
    %v451 = vsel %vm169, %v446, 0
    %453 = vmatpush.bf16.xpose.msra.mxu0 0
    %454 = vmatpush.bf16.xpose.msra.mxu0 0
    %455 = vmatpush.bf16.xpose.msra.mxu0 0
    %456 = vmatpush.bf16.xpose.msra.mxu0 0
    %457 = vmatpush.bf16.xpose.msra.mxu0 0
    %458 = vmatpush.bf16.xpose.msra.mxu0 0
    %459 = vmatpush.bf16.xpose.msra.mxu0 0
    %460 = vmatpush.bf16.xpose.msra.mxu0 %v451
    %461 = vmatmul.bf16.gmra.mxu0 %v448
    %v462 = vpop.f32.mrf.mxu0
    %v463 = vadd.f32 %v110, %v462
    %v464 = vpop.f32.mrf.mxu0
    %465 = vdwg.mxu0
    %466 = vrot.lane.b32.xlu0 %v239, 120
    %v467 = vpop.permute.xlu0 %466
    %468 = vrot.lane.b32.xlu0 %v239, 88
    %v469 = vpop.permute.xlu0 %468
    %v471 = vsel %vm169, %v467, 0
    %v474 = vsel %vm169, %v469, 0
    %476 = vmatpush.bf16.xpose.msra.mxu0 0
    %477 = vmatpush.bf16.xpose.msra.mxu0 0
    %478 = vmatpush.bf16.xpose.msra.mxu0 0
    %479 = vmatpush.bf16.xpose.msra.mxu0 0
    %480 = vmatpush.bf16.xpose.msra.mxu0 0
    %481 = vmatpush.bf16.xpose.msra.mxu0 0
    %482 = vmatpush.bf16.xpose.msra.mxu0 0
    %483 = vmatpush.bf16.xpose.msra.mxu0 %v474
    %484 = vmatmul.bf16.gmra.mxu0 %v471
    %v485 = vpop.f32.mrf.mxu0
    %v486 = vadd.f32 %v111, %v485
    %v487 = vpop.f32.mrf.mxu0
    %488 = vdwg.mxu0
    %v489 = vsel %vm169, %v417, -inf
    %490 = vmax.xlane.f32.xlu0 %v489
    %v491 = vpop.xlane.xlu0 %490
    %v492 = vsel %vm169, %v440, -inf
    %493 = vmax.xlane.f32.xlu0 %v492
    %v494 = vpop.xlane.xlu0 %493
    %v495 = vsel %vm169, %v463, -inf
    %496 = vmax.xlane.f32.xlu0 %v495
    %v497 = vpop.xlane.xlu0 %496
    %v498 = vsel %vm169, %v486, -inf
    %499 = vmax.xlane.f32.xlu0 %v498
    %v500 = vpop.xlane.xlu0 %499
    %v501 = vsub.f32 %v417, %v491
    %v502 = vsub.f32 %v440, %v494
    %v503 = vsub.f32 %v463, %v497
    %v504 = vsub.f32 %v486, %v500
    %v505 = vmul.f32 %v501, 1.442695
    %v506 = vpow.pop %v505
    %v507 = vmul.f32 %v502, 1.442695
    %v508 = vpow.pop %v507
    %v509 = vmul.f32 %v503, 1.442695
    %v510 = vpow.pop %v509
    %v511 = vmul.f32 %v504, 1.442695
    %v512 = vpow.pop %v511
    %v513 = vsel %vm169, %v506, 0.0
    %514 = vadd.xlane.f32.xlu0 %v513
    %v515 = vpop.xlane.xlu0 %514
    %v516 = vsel %vm169, %v508, 0.0
    %517 = vadd.xlane.f32.xlu0 %v516
    %v518 = vpop.xlane.xlu0 %517
    %v519 = vsel %vm169, %v510, 0.0
    %520 = vadd.xlane.f32.xlu0 %v519
    %v521 = vpop.xlane.xlu0 %520
    %v522 = vsel %vm169, %v512, 0.0
    %523 = vadd.xlane.f32.xlu0 %v522
    %v524 = vpop.xlane.xlu0 %523
    %v525 = vrcp.pop %v515
    %v526 = vrcp.pop %v518
    %v527 = vrcp.pop %v521
    %v528 = vrcp.pop %v524
    %v529 = vmul.f32 %v506, %v525
    %v530 = vmul.f32 %v508, %v526
    %v531 = vmul.f32 %v510, %v527
    %v532 = vmul.f32 %v512, %v528
    %v533 = vpack.c.bf16 %v529, %v529
    %v534 = vpack.c.bf16 %v530, %v530
    %v535 = vpack.c.bf16 %v531, %v531
    %v536 = vpack.c.bf16 %v532, %v532
    %537 = vrot.lane.b32.xlu0 %v166, 56
    %v538 = vpop.permute.xlu0 %537
    %v540 = vsel %vm169, %v533, 0
    %v543 = vsel %vm314, %v538, 0
    %545 = vmatpush.bf16.msra.mxu0 0
    %546 = vmatpush.bf16.msra.mxu0 0
    %547 = vmatpush.bf16.msra.mxu0 0
    %548 = vmatpush.bf16.msra.mxu0 0
    %549 = vmatpush.bf16.msra.mxu0 0
    %550 = vmatpush.bf16.msra.mxu0 0
    %551 = vmatpush.bf16.msra.mxu0 0
    %552 = vmatpush.bf16.msra.mxu0 %v543
    %553 = vmatmul.bf16.gmra.mxu0 %v540
    %v554 = vpop.f32.mrf.mxu0
    %v555 = vadd.f32 0.0, %v554
    %v556 = vpop.f32.mrf.mxu0
    %557 = vdwg.mxu0
    %558 = vrot.lane.b32.xlu0 %v191, 56
    %v559 = vpop.permute.xlu0 %558
    %v561 = vsel %vm169, %v534, 0
    %v564 = vsel %vm314, %v559, 0
    %566 = vmatpush.bf16.msra.mxu0 0
    %567 = vmatpush.bf16.msra.mxu0 0
    %568 = vmatpush.bf16.msra.mxu0 0
    %569 = vmatpush.bf16.msra.mxu0 0
    %570 = vmatpush.bf16.msra.mxu0 0
    %571 = vmatpush.bf16.msra.mxu0 0
    %572 = vmatpush.bf16.msra.mxu0 0
    %573 = vmatpush.bf16.msra.mxu0 %v564
    %574 = vmatmul.bf16.gmra.mxu0 %v561
    %v575 = vpop.f32.mrf.mxu0
    %v576 = vadd.f32 0.0, %v575
    %v577 = vpop.f32.mrf.mxu0
    %578 = vdwg.mxu0
    %579 = vrot.lane.b32.xlu0 %v215, 56
    %v580 = vpop.permute.xlu0 %579
    %v582 = vsel %vm169, %v535, 0
    %v585 = vsel %vm314, %v580, 0
    %587 = vmatpush.bf16.msra.mxu0 0
    %588 = vmatpush.bf16.msra.mxu0 0
    %589 = vmatpush.bf16.msra.mxu0 0
    %590 = vmatpush.bf16.msra.mxu0 0
    %591 = vmatpush.bf16.msra.mxu0 0
    %592 = vmatpush.bf16.msra.mxu0 0
    %593 = vmatpush.bf16.msra.mxu0 0
    %594 = vmatpush.bf16.msra.mxu0 %v585
    %595 = vmatmul.bf16.gmra.mxu0 %v582
    %v596 = vpop.f32.mrf.mxu0
    %v597 = vadd.f32 0.0, %v596
    %v598 = vpop.f32.mrf.mxu0
    %599 = vdwg.mxu0
    %600 = vrot.lane.b32.xlu0 %v239, 56
    %v601 = vpop.permute.xlu0 %600
    %v603 = vsel %vm169, %v536, 0
    %v606 = vsel %vm314, %v601, 0
    %608 = vmatpush.bf16.msra.mxu0 0
    %609 = vmatpush.bf16.msra.mxu0 0
    %610 = vmatpush.bf16.msra.mxu0 0
    %611 = vmatpush.bf16.msra.mxu0 0
    %612 = vmatpush.bf16.msra.mxu0 0
    %613 = vmatpush.bf16.msra.mxu0 0
    %614 = vmatpush.bf16.msra.mxu0 0
    %615 = vmatpush.bf16.msra.mxu0 %v606
    %616 = vmatmul.bf16.gmra.mxu0 %v603
    %v617 = vpop.f32.mrf.mxu0
    %v618 = vadd.f32 0.0, %v617
    %v619 = vpop.f32.mrf.mxu0
    %620 = vdwg.mxu0
    %v621 = vpack.c.bf16 %v576, %v555
    %v622 = vpack.c.bf16 %v618, %v597
    %s623 = scalar_lea.vmem [#allocation5], 4
    %v624 = vld [vmem:[%s623] sm:$0xf]
    %v626 = vsel %vm169, %v621, 0
    %v629 = vsel %vm169, %v622, 0
    %v632 = vsel %vm314, %v624, 0
    %634 = vmatpush.bf16.msra.mxu0 0
    %635 = vmatpush.bf16.msra.mxu0 0
    %636 = vmatpush.bf16.msra.mxu0 0
    %637 = vmatpush.bf16.msra.mxu0 0
    %638 = vmatpush.bf16.msra.mxu0 0
    %639 = vmatpush.bf16.msra.mxu0 0
    %640 = vmatpush.bf16.msra.mxu0 0
    %641 = vmatpush.bf16.msra.mxu0 %v632
    %642 = vmatmul.bf16.gmra.mxu0 %v626
    %v643 = vpop.f32.mrf.mxu0
    %v644 = vadd.f32 0.0, %v643
    %v645 = vpop.f32.mrf.mxu0
    %v646 = vadd.f32 0.0, %v645
    %647 = vmatmul.bf16.gmra.mxu0 %v629
    %v648 = vpop.f32.mrf.mxu0
    %v649 = vadd.f32 0.0, %v648
    %v650 = vpop.f32.mrf.mxu0
    %v651 = vadd.f32 0.0, %v650
    %652 = vdwg.mxu0
    %v654 = vsel %vm169, %v394, 0
    %v657 = vsel %vm169, %v395, 0
    %v660 = vsel %vm314, %v396, 0
    %662 = vmatpush.bf16.msra.mxu0 0
    %663 = vmatpush.bf16.msra.mxu0 0
    %664 = vmatpush.bf16.msra.mxu0 0
    %665 = vmatpush.bf16.msra.mxu0 0
    %666 = vmatpush.bf16.msra.mxu0 0
    %667 = vmatpush.bf16.msra.mxu0 0
    %668 = vmatpush.bf16.msra.mxu0 0
    %669 = vmatpush.bf16.msra.mxu0 %v660
    %670 = vmatmul.bf16.gmra.mxu0 %v654
    %v671 = vpop.f32.mrf.mxu0
    %v672 = vadd.f32 %v644, %v671
    %v673 = vpop.f32.mrf.mxu0
    %v674 = vadd.f32 %v646, %v673
    %675 = vmatmul.bf16.gmra.mxu0 %v657
    %v676 = vpop.f32.mrf.mxu0
    %v677 = vadd.f32 %v649, %v676
    %v678 = vpop.f32.mrf.mxu0
    %v679 = vadd.f32 %v651, %v678
    %680 = vdwg.mxu0
    %681 = vrot.lane.b32.xlu0 %v166, 112
    %v682 = vpop.permute.xlu0 %681
    %683 = vrot.lane.b32.xlu0 %v166, 80
    %v684 = vpop.permute.xlu0 %683
    %v686 = vsel %vm169, %v682, 0
    %v689 = vsel %vm169, %v684, 0
    %691 = vmatpush.bf16.xpose.msra.mxu0 0
    %692 = vmatpush.bf16.xpose.msra.mxu0 0
    %693 = vmatpush.bf16.xpose.msra.mxu0 0
    %694 = vmatpush.bf16.xpose.msra.mxu0 0
    %695 = vmatpush.bf16.xpose.msra.mxu0 0
    %696 = vmatpush.bf16.xpose.msra.mxu0 0
    %697 = vmatpush.bf16.xpose.msra.mxu0 0
    %698 = vmatpush.bf16.xpose.msra.mxu0 %v689
    %699 = vmatmul.bf16.gmra.mxu0 %v686
    %v700 = vpop.f32.mrf.mxu0
    %v701 = vadd.f32 %v108, %v700
    %v702 = vpop.f32.mrf.mxu0
    %703 = vdwg.mxu0
    %704 = vrot.lane.b32.xlu0 %v191, 112
    %v705 = vpop.permute.xlu0 %704
    %706 = vrot.lane.b32.xlu0 %v191, 80
    %v707 = vpop.permute.xlu0 %706
    %v709 = vsel %vm169, %v705, 0
    %v712 = vsel %vm169, %v707, 0
    %714 = vmatpush.bf16.xpose.msra.mxu0 0
    %715 = vmatpush.bf16.xpose.msra.mxu0 0
    %716 = vmatpush.bf16.xpose.msra.mxu0 0
    %717 = vmatpush.bf16.xpose.msra.mxu0 0
    %718 = vmatpush.bf16.xpose.msra.mxu0 0
    %719 = vmatpush.bf16.xpose.msra.mxu0 0
    %720 = vmatpush.bf16.xpose.msra.mxu0 0
    %721 = vmatpush.bf16.xpose.msra.mxu0 %v712
    %722 = vmatmul.bf16.gmra.mxu0 %v709
    %v723 = vpop.f32.mrf.mxu0
    %v724 = vadd.f32 %v109, %v723
    %v725 = vpop.f32.mrf.mxu0
    %726 = vdwg.mxu0
    %727 = vrot.lane.b32.xlu0 %v215, 112
    %v728 = vpop.permute.xlu0 %727
    %729 = vrot.lane.b32.xlu0 %v215, 80
    %v730 = vpop.permute.xlu0 %729
    %v732 = vsel %vm169, %v728, 0
    %v735 = vsel %vm169, %v730, 0
    %737 = vmatpush.bf16.xpose.msra.mxu0 0
    %738 = vmatpush.bf16.xpose.msra.mxu0 0
    %739 = vmatpush.bf16.xpose.msra.mxu0 0
    %740 = vmatpush.bf16.xpose.msra.mxu0 0
    %741 = vmatpush.bf16.xpose.msra.mxu0 0
    %742 = vmatpush.bf16.xpose.msra.mxu0 0
    %743 = vmatpush.bf16.xpose.msra.mxu0 0
    %744 = vmatpush.bf16.xpose.msra.mxu0 %v735
    %745 = vmatmul.bf16.gmra.mxu0 %v732
    %v746 = vpop.f32.mrf.mxu0
    %v747 = vadd.f32 %v110, %v746
    %v748 = vpop.f32.mrf.mxu0
    %749 = vdwg.mxu0
    %750 = vrot.lane.b32.xlu0 %v239, 112
    %v751 = vpop.permute.xlu0 %750
    %752 = vrot.lane.b32.xlu0 %v239, 80
    %v753 = vpop.permute.xlu0 %752
    %v755 = vsel %vm169, %v751, 0
    %v758 = vsel %vm169, %v753, 0
    %760 = vmatpush.bf16.xpose.msra.mxu0 0
    %761 = vmatpush.bf16.xpose.msra.mxu0 0
    %762 = vmatpush.bf16.xpose.msra.mxu0 0
    %763 = vmatpush.bf16.xpose.msra.mxu0 0
    %764 = vmatpush.bf16.xpose.msra.mxu0 0
    %765 = vmatpush.bf16.xpose.msra.mxu0 0
    %766 = vmatpush.bf16.xpose.msra.mxu0 0
    %767 = vmatpush.bf16.xpose.msra.mxu0 %v758
    %768 = vmatmul.bf16.gmra.mxu0 %v755
    %v769 = vpop.f32.mrf.mxu0
    %v770 = vadd.f32 %v111, %v769
    %v771 = vpop.f32.mrf.mxu0
    %772 = vdwg.mxu0
    %v773 = vsel %vm169, %v701, -inf
    %774 = vmax.xlane.f32.xlu0 %v773
    %v775 = vpop.xlane.xlu0 %774
    %v776 = vsel %vm169, %v724, -inf
    %777 = vmax.xlane.f32.xlu0 %v776
    %v778 = vpop.xlane.xlu0 %777
    %v779 = vsel %vm169, %v747, -inf
    %780 = vmax.xlane.f32.xlu0 %v779
    %v781 = vpop.xlane.xlu0 %780
    %v782 = vsel %vm169, %v770, -inf
    %783 = vmax.xlane.f32.xlu0 %v782
    %v784 = vpop.xlane.xlu0 %783
    %v785 = vsub.f32 %v701, %v775
    %v786 = vsub.f32 %v724, %v778
    %v787 = vsub.f32 %v747, %v781
    %v788 = vsub.f32 %v770, %v784
    %v789 = vmul.f32 %v785, 1.442695
    %v790 = vpow.pop %v789
    %v791 = vmul.f32 %v786, 1.442695
    %v792 = vpow.pop %v791
    %v793 = vmul.f32 %v787, 1.442695
    %v794 = vpow.pop %v793
    %v795 = vmul.f32 %v788, 1.442695
    %v796 = vpow.pop %v795
    %v797 = vsel %vm169, %v790, 0.0
    %798 = vadd.xlane.f32.xlu0 %v797
    %v799 = vpop.xlane.xlu0 %798
    %v800 = vsel %vm169, %v792, 0.0
    %801 = vadd.xlane.f32.xlu0 %v800
    %v802 = vpop.xlane.xlu0 %801
    %v803 = vsel %vm169, %v794, 0.0
    %804 = vadd.xlane.f32.xlu0 %v803
    %v805 = vpop.xlane.xlu0 %804
    %v806 = vsel %vm169, %v796, 0.0
    %807 = vadd.xlane.f32.xlu0 %v806
    %v808 = vpop.xlane.xlu0 %807
    %v809 = vrcp.pop %v799
    %v810 = vrcp.pop %v802
    %v811 = vrcp.pop %v805
    %v812 = vrcp.pop %v808
    %v813 = vmul.f32 %v790, %v809
    %v814 = vmul.f32 %v792, %v810
    %v815 = vmul.f32 %v794, %v811
    %v816 = vmul.f32 %v796, %v812
    %v817 = vpack.c.bf16 %v813, %v813
    %v818 = vpack.c.bf16 %v814, %v814
    %v819 = vpack.c.bf16 %v815, %v815
    %v820 = vpack.c.bf16 %v816, %v816
    %821 = vrot.lane.b32.xlu0 %v166, 48
    %v822 = vpop.permute.xlu0 %821
    %v824 = vsel %vm169, %v817, 0
    %v827 = vsel %vm314, %v822, 0
    %829 = vmatpush.bf16.msra.mxu0 0
    %830 = vmatpush.bf16.msra.mxu0 0
    %831 = vmatpush.bf16.msra.mxu0 0
    %832 = vmatpush.bf16.msra.mxu0 0
    %833 = vmatpush.bf16.msra.mxu0 0
    %834 = vmatpush.bf16.msra.mxu0 0
    %835 = vmatpush.bf16.msra.mxu0 0
    %836 = vmatpush.bf16.msra.mxu0 %v827
    %837 = vmatmul.bf16.gmra.mxu0 %v824
    %v838 = vpop.f32.mrf.mxu0
    %v839 = vadd.f32 0.0, %v838
    %v840 = vpop.f32.mrf.mxu0
    %841 = vdwg.mxu0
    %842 = vrot.lane.b32.xlu0 %v191, 48
    %v843 = vpop.permute.xlu0 %842
    %v845 = vsel %vm169, %v818, 0
    %v848 = vsel %vm314, %v843, 0
    %850 = vmatpush.bf16.msra.mxu0 0
    %851 = vmatpush.bf16.msra.mxu0 0
    %852 = vmatpush.bf16.msra.mxu0 0
    %853 = vmatpush.bf16.msra.mxu0 0
    %854 = vmatpush.bf16.msra.mxu0 0
    %855 = vmatpush.bf16.msra.mxu0 0
    %856 = vmatpush.bf16.msra.mxu0 0
    %857 = vmatpush.bf16.msra.mxu0 %v848
    %858 = vmatmul.bf16.gmra.mxu0 %v845
    %v859 = vpop.f32.mrf.mxu0
    %v860 = vadd.f32 0.0, %v859
    %v861 = vpop.f32.mrf.mxu0
    %862 = vdwg.mxu0
    %863 = vrot.lane.b32.xlu0 %v215, 48
    %v864 = vpop.permute.xlu0 %863
    %v866 = vsel %vm169, %v819, 0
    %v869 = vsel %vm314, %v864, 0
    %871 = vmatpush.bf16.msra.mxu0 0
    %872 = vmatpush.bf16.msra.mxu0 0
    %873 = vmatpush.bf16.msra.mxu0 0
    %874 = vmatpush.bf16.msra.mxu0 0
    %875 = vmatpush.bf16.msra.mxu0 0
    %876 = vmatpush.bf16.msra.mxu0 0
    %877 = vmatpush.bf16.msra.mxu0 0
    %878 = vmatpush.bf16.msra.mxu0 %v869
    %879 = vmatmul.bf16.gmra.mxu0 %v866
    %v880 = vpop.f32.mrf.mxu0
    %v881 = vadd.f32 0.0, %v880
    %v882 = vpop.f32.mrf.mxu0
    %883 = vdwg.mxu0
    %884 = vrot.lane.b32.xlu0 %v239, 48
    %v885 = vpop.permute.xlu0 %884
    %v887 = vsel %vm169, %v820, 0
    %v890 = vsel %vm314, %v885, 0
    %892 = vmatpush.bf16.msra.mxu0 0
    %893 = vmatpush.bf16.msra.mxu0 0
    %894 = vmatpush.bf16.msra.mxu0 0
    %895 = vmatpush.bf16.msra.mxu0 0
    %896 = vmatpush.bf16.msra.mxu0 0
    %897 = vmatpush.bf16.msra.mxu0 0
    %898 = vmatpush.bf16.msra.mxu0 0
    %899 = vmatpush.bf16.msra.mxu0 %v890
    %900 = vmatmul.bf16.gmra.mxu0 %v887
    %v901 = vpop.f32.mrf.mxu0
    %v902 = vadd.f32 0.0, %v901
    %v903 = vpop.f32.mrf.mxu0
    %904 = vdwg.mxu0
    %v905 = vpack.c.bf16 %v860, %v839
    %v906 = vpack.c.bf16 %v902, %v881
    %s907 = scalar_lea.vmem [#allocation5], 8
    %v908 = vld [vmem:[%s907] sm:$0xf]
    %v910 = vsel %vm169, %v905, 0
    %v913 = vsel %vm169, %v906, 0
    %v916 = vsel %vm314, %v908, 0
    %918 = vmatpush.bf16.msra.mxu0 0
    %919 = vmatpush.bf16.msra.mxu0 0
    %920 = vmatpush.bf16.msra.mxu0 0
    %921 = vmatpush.bf16.msra.mxu0 0
    %922 = vmatpush.bf16.msra.mxu0 0
    %923 = vmatpush.bf16.msra.mxu0 0
    %924 = vmatpush.bf16.msra.mxu0 0
    %925 = vmatpush.bf16.msra.mxu0 %v916
    %926 = vmatmul.bf16.gmra.mxu0 %v910
    %v927 = vpop.f32.mrf.mxu0
    %v928 = vadd.f32 0.0, %v927
    %v929 = vpop.f32.mrf.mxu0
    %v930 = vadd.f32 0.0, %v929
    %931 = vmatmul.bf16.gmra.mxu0 %v913
    %v932 = vpop.f32.mrf.mxu0
    %v933 = vadd.f32 0.0, %v932
    %v934 = vpop.f32.mrf.mxu0
    %v935 = vadd.f32 0.0, %v934
    %936 = vdwg.mxu0
    %v937 = vadd.f32 %v672, %v928
    %v938 = vadd.f32 %v674, %v930
    %v939 = vadd.f32 %v677, %v933
    %v940 = vadd.f32 %v679, %v935
    %941 = vrot.lane.b32.xlu0 %v166, 104
    %v942 = vpop.permute.xlu0 %941
    %943 = vrot.lane.b32.xlu0 %v166, 72
    %v944 = vpop.permute.xlu0 %943
    %v946 = vsel %vm169, %v942, 0
    %v949 = vsel %vm169, %v944, 0
    %951 = vmatpush.bf16.xpose.msra.mxu0 0
    %952 = vmatpush.bf16.xpose.msra.mxu0 0
    %953 = vmatpush.bf16.xpose.msra.mxu0 0
    %954 = vmatpush.bf16.xpose.msra.mxu0 0
    %955 = vmatpush.bf16.xpose.msra.mxu0 0
    %956 = vmatpush.bf16.xpose.msra.mxu0 0
    %957 = vmatpush.bf16.xpose.msra.mxu0 0
    %958 = vmatpush.bf16.xpose.msra.mxu0 %v949
    %959 = vmatmul.bf16.gmra.mxu0 %v946
    %v960 = vpop.f32.mrf.mxu0
    %v961 = vadd.f32 %v108, %v960
    %v962 = vpop.f32.mrf.mxu0
    %963 = vdwg.mxu0
    %964 = vrot.lane.b32.xlu0 %v191, 104
    %v965 = vpop.permute.xlu0 %964
    %966 = vrot.lane.b32.xlu0 %v191, 72
    %v967 = vpop.permute.xlu0 %966
    %v969 = vsel %vm169, %v965, 0
    %v972 = vsel %vm169, %v967, 0
    %974 = vmatpush.bf16.xpose.msra.mxu0 0
    %975 = vmatpush.bf16.xpose.msra.mxu0 0
    %976 = vmatpush.bf16.xpose.msra.mxu0 0
    %977 = vmatpush.bf16.xpose.msra.mxu0 0
    %978 = vmatpush.bf16.xpose.msra.mxu0 0
    %979 = vmatpush.bf16.xpose.msra.mxu0 0
    %980 = vmatpush.bf16.xpose.msra.mxu0 0
    %981 = vmatpush.bf16.xpose.msra.mxu0 %v972
    %982 = vmatmul.bf16.gmra.mxu0 %v969
    %v983 = vpop.f32.mrf.mxu0
    %v984 = vadd.f32 %v109, %v983
    %v985 = vpop.f32.mrf.mxu0
    %986 = vdwg.mxu0
    %987 = vrot.lane.b32.xlu0 %v215, 104
    %v988 = vpop.permute.xlu0 %987
    %989 = vrot.lane.b32.xlu0 %v215, 72
    %v990 = vpop.permute.xlu0 %989
    %v992 = vsel %vm169, %v988, 0
    %v995 = vsel %vm169, %v990, 0
    %997 = vmatpush.bf16.xpose.msra.mxu0 0
    %998 = vmatpush.bf16.xpose.msra.mxu0 0
    %999 = vmatpush.bf16.xpose.msra.mxu0 0
    %1000 = vmatpush.bf16.xpose.msra.mxu0 0
    %1001 = vmatpush.bf16.xpose.msra.mxu0 0
    %1002 = vmatpush.bf16.xpose.msra.mxu0 0
    %1003 = vmatpush.bf16.xpose.msra.mxu0 0
    %1004 = vmatpush.bf16.xpose.msra.mxu0 %v995
    %1005 = vmatmul.bf16.gmra.mxu0 %v992
    %v1006 = vpop.f32.mrf.mxu0
    %v1007 = vadd.f32 %v110, %v1006
    %v1008 = vpop.f32.mrf.mxu0
    %1009 = vdwg.mxu0
    %1010 = vrot.lane.b32.xlu0 %v239, 104
    %v1011 = vpop.permute.xlu0 %1010
    %1012 = vrot.lane.b32.xlu0 %v239, 72
    %v1013 = vpop.permute.xlu0 %1012
    %v1015 = vsel %vm169, %v1011, 0
    %v1018 = vsel %vm169, %v1013, 0
    %1020 = vmatpush.bf16.xpose.msra.mxu0 0
    %1021 = vmatpush.bf16.xpose.msra.mxu0 0
    %1022 = vmatpush.bf16.xpose.msra.mxu0 0
    %1023 = vmatpush.bf16.xpose.msra.mxu0 0
    %1024 = vmatpush.bf16.xpose.msra.mxu0 0
    %1025 = vmatpush.bf16.xpose.msra.mxu0 0
    %1026 = vmatpush.bf16.xpose.msra.mxu0 0
    %1027 = vmatpush.bf16.xpose.msra.mxu0 %v1018
    %1028 = vmatmul.bf16.gmra.mxu0 %v1015
    %v1029 = vpop.f32.mrf.mxu0
    %v1030 = vadd.f32 %v111, %v1029
    %v1031 = vpop.f32.mrf.mxu0
    %1032 = vdwg.mxu0
    %v1033 = vsel %vm169, %v961, -inf
    %1034 = vmax.xlane.f32.xlu0 %v1033
    %v1035 = vpop.xlane.xlu0 %1034
    %v1036 = vsel %vm169, %v984, -inf
    %1037 = vmax.xlane.f32.xlu0 %v1036
    %v1038 = vpop.xlane.xlu0 %1037
    %v1039 = vsel %vm169, %v1007, -inf
    %1040 = vmax.xlane.f32.xlu0 %v1039
    %v1041 = vpop.xlane.xlu0 %1040
    %v1042 = vsel %vm169, %v1030, -inf
    %1043 = vmax.xlane.f32.xlu0 %v1042
    %v1044 = vpop.xlane.xlu0 %1043
    %v1045 = vsub.f32 %v961, %v1035
    %v1046 = vsub.f32 %v984, %v1038
    %v1047 = vsub.f32 %v1007, %v1041
    %v1048 = vsub.f32 %v1030, %v1044
    %v1049 = vmul.f32 %v1045, 1.442695
    %v1050 = vpow.pop %v1049
    %v1051 = vmul.f32 %v1046, 1.442695
    %v1052 = vpow.pop %v1051
    %v1053 = vmul.f32 %v1047, 1.442695
    %v1054 = vpow.pop %v1053
    %v1055 = vmul.f32 %v1048, 1.442695
    %v1056 = vpow.pop %v1055
    %v1057 = vsel %vm169, %v1050, 0.0
    %1058 = vadd.xlane.f32.xlu0 %v1057
    %v1059 = vpop.xlane.xlu0 %1058
    %v1060 = vsel %vm169, %v1052, 0.0
    %1061 = vadd.xlane.f32.xlu0 %v1060
    %v1062 = vpop.xlane.xlu0 %1061
    %v1063 = vsel %vm169, %v1054, 0.0
    %1064 = vadd.xlane.f32.xlu0 %v1063
    %v1065 = vpop.xlane.xlu0 %1064
    %v1066 = vsel %vm169, %v1056, 0.0
    %1067 = vadd.xlane.f32.xlu0 %v1066
    %v1068 = vpop.xlane.xlu0 %1067
    %v1069 = vrcp.pop %v1059
    %v1070 = vrcp.pop %v1062
    %v1071 = vrcp.pop %v1065
    %v1072 = vrcp.pop %v1068
    %v1073 = vmul.f32 %v1050, %v1069
    %v1074 = vmul.f32 %v1052, %v1070
    %v1075 = vmul.f32 %v1054, %v1071
    %v1076 = vmul.f32 %v1056, %v1072
    %v1077 = vpack.c.bf16 %v1073, %v1073
    %v1078 = vpack.c.bf16 %v1074, %v1074
    %v1079 = vpack.c.bf16 %v1075, %v1075
    %v1080 = vpack.c.bf16 %v1076, %v1076
    %1081 = vrot.lane.b32.xlu0 %v166, 40
    %v1082 = vpop.permute.xlu0 %1081
    %v1084 = vsel %vm169, %v1077, 0
    %v1087 = vsel %vm314, %v1082, 0
    %1089 = vmatpush.bf16.msra.mxu0 0
    %1090 = vmatpush.bf16.msra.mxu0 0
    %1091 = vmatpush.bf16.msra.mxu0 0
    %1092 = vmatpush.bf16.msra.mxu0 0
    %1093 = vmatpush.bf16.msra.mxu0 0
    %1094 = vmatpush.bf16.msra.mxu0 0
    %1095 = vmatpush.bf16.msra.mxu0 0
    %1096 = vmatpush.bf16.msra.mxu0 %v1087
    %1097 = vmatmul.bf16.gmra.mxu0 %v1084
    %v1098 = vpop.f32.mrf.mxu0
    %v1099 = vadd.f32 0.0, %v1098
    %v1100 = vpop.f32.mrf.mxu0
    %1101 = vdwg.mxu0
    %1102 = vrot.lane.b32.xlu0 %v191, 40
    %v1103 = vpop.permute.xlu0 %1102
    %v1105 = vsel %vm169, %v1078, 0
    %v1108 = vsel %vm314, %v1103, 0
    %1110 = vmatpush.bf16.msra.mxu0 0
    %1111 = vmatpush.bf16.msra.mxu0 0
    %1112 = vmatpush.bf16.msra.mxu0 0
    %1113 = vmatpush.bf16.msra.mxu0 0
    %1114 = vmatpush.bf16.msra.mxu0 0
    %1115 = vmatpush.bf16.msra.mxu0 0
    %1116 = vmatpush.bf16.msra.mxu0 0
    %1117 = vmatpush.bf16.msra.mxu0 %v1108
    %1118 = vmatmul.bf16.gmra.mxu0 %v1105
    %v1119 = vpop.f32.mrf.mxu0
    %v1120 = vadd.f32 0.0, %v1119
    %v1121 = vpop.f32.mrf.mxu0
    %1122 = vdwg.mxu0
    %1123 = vrot.lane.b32.xlu0 %v215, 40
    %v1124 = vpop.permute.xlu0 %1123
    %v1126 = vsel %vm169, %v1079, 0
    %v1129 = vsel %vm314, %v1124, 0
    %1131 = vmatpush.bf16.msra.mxu0 0
    %1132 = vmatpush.bf16.msra.mxu0 0
    %1133 = vmatpush.bf16.msra.mxu0 0
    %1134 = vmatpush.bf16.msra.mxu0 0
    %1135 = vmatpush.bf16.msra.mxu0 0
    %1136 = vmatpush.bf16.msra.mxu0 0
    %1137 = vmatpush.bf16.msra.mxu0 0
    %1138 = vmatpush.bf16.msra.mxu0 %v1129
    %1139 = vmatmul.bf16.gmra.mxu0 %v1126
    %v1140 = vpop.f32.mrf.mxu0
    %v1141 = vadd.f32 0.0, %v1140
    %v1142 = vpop.f32.mrf.mxu0
    %1143 = vdwg.mxu0
    %1144 = vrot.lane.b32.xlu0 %v239, 40
    %v1145 = vpop.permute.xlu0 %1144
    %v1147 = vsel %vm169, %v1080, 0
    %v1150 = vsel %vm314, %v1145, 0
    %1152 = vmatpush.bf16.msra.mxu0 0
    %1153 = vmatpush.bf16.msra.mxu0 0
    %1154 = vmatpush.bf16.msra.mxu0 0
    %1155 = vmatpush.bf16.msra.mxu0 0
    %1156 = vmatpush.bf16.msra.mxu0 0
    %1157 = vmatpush.bf16.msra.mxu0 0
    %1158 = vmatpush.bf16.msra.mxu0 0
    %1159 = vmatpush.bf16.msra.mxu0 %v1150
    %1160 = vmatmul.bf16.gmra.mxu0 %v1147
    %v1161 = vpop.f32.mrf.mxu0
    %v1162 = vadd.f32 0.0, %v1161
    %v1163 = vpop.f32.mrf.mxu0
    %1164 = vdwg.mxu0
    %v1165 = vpack.c.bf16 %v1120, %v1099
    %v1166 = vpack.c.bf16 %v1162, %v1141
    %s1167 = scalar_lea.vmem [#allocation5], 12
    %v1168 = vld [vmem:[%s1167] sm:$0xf]
    %v1170 = vsel %vm169, %v1165, 0
    %v1173 = vsel %vm169, %v1166, 0
    %v1176 = vsel %vm314, %v1168, 0
    %1178 = vmatpush.bf16.msra.mxu0 0
    %1179 = vmatpush.bf16.msra.mxu0 0
    %1180 = vmatpush.bf16.msra.mxu0 0
    %1181 = vmatpush.bf16.msra.mxu0 0
    %1182 = vmatpush.bf16.msra.mxu0 0
    %1183 = vmatpush.bf16.msra.mxu0 0
    %1184 = vmatpush.bf16.msra.mxu0 0
    %1185 = vmatpush.bf16.msra.mxu0 %v1176
    %1186 = vmatmul.bf16.gmra.mxu0 %v1170
    %v1187 = vpop.f32.mrf.mxu0
    %v1188 = vadd.f32 0.0, %v1187
    %v1189 = vpop.f32.mrf.mxu0
    %v1190 = vadd.f32 0.0, %v1189
    %1191 = vmatmul.bf16.gmra.mxu0 %v1173
    %v1192 = vpop.f32.mrf.mxu0
    %v1193 = vadd.f32 0.0, %v1192
    %v1194 = vpop.f32.mrf.mxu0
    %v1195 = vadd.f32 0.0, %v1194
    %1196 = vdwg.mxu0
    %v1197 = vadd.f32 %v937, %v1188
    %v1198 = vadd.f32 %v938, %v1190
    %v1199 = vadd.f32 %v939, %v1193
    %v1200 = vadd.f32 %v940, %v1195
    %v1201 = vld [vmem:[%s5] sm:$0x1]
    %v1203 = vperm.slane %v1201, 0
    %v1205 = vadd.f32 %v1197, %v1203
    %v1206 = vadd.f32 %v1198, %v1203
    %v1207 = vadd.f32 %v1199, %v1203
    %v1208 = vadd.f32 %v1200, %v1203
    %v1209 = vadd.f32 %v96, %v1205
    %v1210 = vadd.f32 %v97, %v1206
    %v1211 = vadd.f32 %v98, %v1207
    %v1212 = vadd.f32 %v99, %v1208
    %v1213 = vsel %vm134, %v1209, 0.0
    %1214 = vadd.xlane.f32.xlu0 %v1213
    %v1215 = vpop.xlane.xlu0 %1214
    %v1216 = vsel %vm134, %v1210, 0.0
    %1217 = vadd.xlane.f32.xlu0 %v1216
    %v1218 = vpop.xlane.xlu0 %1217
    %v1219 = vsel %vm134, %v1211, 0.0
    %1220 = vadd.xlane.f32.xlu0 %v1219
    %v1221 = vpop.xlane.xlu0 %1220
    %v1222 = vsel %vm134, %v1212, 0.0
    %1223 = vadd.xlane.f32.xlu0 %v1222
    %v1224 = vpop.xlane.xlu0 %1223
    %v1225 = vrcp.pop 32.0
    %v1226 = vmul.f32 32.0, %v1225
    %v1227 = vsub.f32 1.0, %v1226
    %v1228 = vmul.f32 %v1225, %v1227
    %v1229 = vadd.f32 %v1225, %v1228
    %vm1230 = vweird.f32 %v1225
    %v1231 = vsel %vm1230, %v1225, %v1229
    %v1232 = vmul.f32 %v1215, %v1231
    %v1233 = vmul.f32 %v1218, %v1231
    %v1234 = vmul.f32 %v1221, %v1231
    %v1235 = vmul.f32 %v1224, %v1231
    %v1236 = vsub.f32 %v1209, %v1232
    %v1237 = vsub.f32 %v1210, %v1233
    %v1238 = vsub.f32 %v1211, %v1234
    %v1239 = vsub.f32 %v1212, %v1235
    %v1240 = vmul.f32 %v1236, %v1236
    %v1241 = vmul.f32 %v1237, %v1237
    %v1242 = vmul.f32 %v1238, %v1238
    %v1243 = vmul.f32 %v1239, %v1239
    %v1244 = vsel %vm134, %v1240, 0.0
    %1245 = vadd.xlane.f32.xlu0 %v1244
    %v1246 = vpop.xlane.xlu0 %1245
    %v1247 = vsel %vm134, %v1241, 0.0
    %1248 = vadd.xlane.f32.xlu0 %v1247
    %v1249 = vpop.xlane.xlu0 %1248
    %v1250 = vsel %vm134, %v1242, 0.0
    %1251 = vadd.xlane.f32.xlu0 %v1250
    %v1252 = vpop.xlane.xlu0 %1251
    %v1253 = vsel %vm134, %v1243, 0.0
    %1254 = vadd.xlane.f32.xlu0 %v1253
    %v1255 = vpop.xlane.xlu0 %1254
    %v1256 = vmul.f32 %v1246, %v1231
    %v1257 = vmul.f32 %v1249, %v1231
    %v1258 = vmul.f32 %v1252, %v1231
    %v1259 = vmul.f32 %v1255, %v1231
    %v1260 = vadd.f32 %v1256, 1e-05
    %v1261 = vadd.f32 %v1257, 1e-05
    %v1262 = vadd.f32 %v1258, 1e-05
    %v1263 = vadd.f32 %v1259, 1e-05
    %v1264 = vrsqrt.pop %v1260
    %v1265 = vmul.f32 %v1264, %v1260
    %v1266 = vmul.f32 %v1265, %v1264
    %v1267 = vmul.f32 0.5, %v1266
    %v1268 = vsub.f32 1.5, %v1267
    %v1269 = vmul.f32 %v1264, %v1268
    %vm1270 = vweird.f32 %v1260
    %vm1271 = vweird.f32 %v1264
    %vm1272 = vmor %vm1270, %vm1271
    %v1273 = vsel %vm1272, %v1264, %v1269
    %v1274 = vrsqrt.pop %v1261
    %v1275 = vmul.f32 %v1274, %v1261
    %v1276 = vmul.f32 %v1275, %v1274
    %v1277 = vmul.f32 0.5, %v1276
    %v1278 = vsub.f32 1.5, %v1277
    %v1279 = vmul.f32 %v1274, %v1278
    %vm1280 = vweird.f32 %v1261
    %vm1281 = vweird.f32 %v1274
    %vm1282 = vmor %vm1280, %vm1281
    %v1283 = vsel %vm1282, %v1274, %v1279
    %v1284 = vrsqrt.pop %v1262
    %v1285 = vmul.f32 %v1284, %v1262
    %v1286 = vmul.f32 %v1285, %v1284
    %v1287 = vmul.f32 0.5, %v1286
    %v1288 = vsub.f32 1.5, %v1287
    %v1289 = vmul.f32 %v1284, %v1288
    %vm1290 = vweird.f32 %v1262
    %vm1291 = vweird.f32 %v1284
    %vm1292 = vmor %vm1290, %vm1291
    %v1293 = vsel %vm1292, %v1284, %v1289
    %v1294 = vrsqrt.pop %v1263
    %v1295 = vmul.f32 %v1294, %v1263
    %v1296 = vmul.f32 %v1295, %v1294
    %v1297 = vmul.f32 0.5, %v1296
    %v1298 = vsub.f32 1.5, %v1297
    %v1299 = vmul.f32 %v1294, %v1298
    %vm1300 = vweird.f32 %v1263
    %vm1301 = vweird.f32 %v1294
    %vm1302 = vmor %vm1300, %vm1301
    %v1303 = vsel %vm1302, %v1294, %v1299
    %v1304 = vmul.f32 %v1236, %v1273
    %v1305 = vmul.f32 %v1237, %v1283
    %v1306 = vmul.f32 %v1238, %v1293
    %v1307 = vmul.f32 %v1239, %v1303
    %v1308 = vld [vmem:[%s10] sm:$0x1]
    %v1310 = vperm.slane %v1308, 0
    %v1312 = vmul.f32 %v1304, %v1310
    %v1313 = vmul.f32 %v1305, %v1310
    %v1314 = vmul.f32 %v1306, %v1310
    %v1315 = vmul.f32 %v1307, %v1310
    %v1316 = vld [vmem:[%s11] sm:$0x1]
    %v1318 = vperm.slane %v1316, 0
    %v1320 = vadd.f32 %v1312, %v1318
    %v1321 = vadd.f32 %v1313, %v1318
    %v1322 = vadd.f32 %v1314, %v1318
    %v1323 = vadd.f32 %v1315, %v1318
    %v1324 = vpack.c.bf16 %v1321, %v1320
    %v1325 = vpack.c.bf16 %v1323, %v1322
    %v1326 = vld [vmem:[#allocation7] sm:$0xf]
    %v1327 = vld [vmem:[#allocation7 + $0x4] sm:$0xf]
    %v1328 = vld [vmem:[#allocation7 + $0x8] sm:$0xf]
    %v1329 = vld [vmem:[#allocation7 + $0xc] sm:$0xf]
    %v1330 = vld [vmem:[%s7] sm:$0x1]
    %v1332 = vperm.slane %v1330, 0
    %v1338 = vunpack.c.l.b16 %v1326
    %v1339 = vunpack.c.l.b16 %v1327
    %v1340 = vunpack.c.l.b16 %v1328
    %v1341 = vunpack.c.l.b16 %v1329
    %v1342 = vpack.c.b16 %v1339, %v1338
    %v1343 = vpack.c.b16 %v1341, %v1340
    %v1347 = vsel %vm134, %v1324, 0
    %v1350 = vsel %vm134, %v1325, 0
    %1352 = vmatpush.bf16.msra.mxu0 0
    %1353 = vmatpush.bf16.msra.mxu0 0
    %1354 = vmatpush.bf16.msra.mxu0 0
    %1355 = vmatpush.bf16.msra.mxu0 0
    %1356 = vmatpush.bf16.msra.mxu0 0
    %1357 = vmatpush.bf16.msra.mxu0 0
    %1358 = vmatpush.bf16.msra.mxu0 %v1343
    %1359 = vmatpush.bf16.msra.mxu0 %v1342
    %1360 = vmatmul.bf16.gmra.mxu0 %v1347
    %v1361 = vpop.f32.mrf.mxu0
    %v1362 = vadd.f32 %v1332, %v1361
    %v1363 = vpop.f32.mrf.mxu0
    %v1364 = vadd.f32 %v1332, %v1363
    %1365 = vmatmul.bf16.gmra.mxu0 %v1350
    %v1366 = vpop.f32.mrf.mxu0
    %v1367 = vadd.f32 %v1332, %v1366
    %v1368 = vpop.f32.mrf.mxu0
    %v1369 = vadd.f32 %v1332, %v1368
    %1370 = vdwg.mxu0
    %v1371 = vmax.f32 %v1362, 0.0
    %v1372 = vmax.f32 %v1364, 0.0
    %v1373 = vmax.f32 %v1367, 0.0
    %v1374 = vmax.f32 %v1369, 0.0
    %v1375 = vpack.c.bf16 %v1372, %v1371
    %v1376 = vpack.c.bf16 %v1374, %v1373
    %v1377 = vld [vmem:[%s8] sm:$0xf]
    %v1378 = vld [vmem:[%s8 + $0x4] sm:$0xf]
    %v1379 = vld [vmem:[%s8 + $0x8] sm:$0xf]
    %v1380 = vld [vmem:[%s8 + $0xc] sm:$0xf]
    %v1381 = vld [vmem:[%s8 + $0x10] sm:$0xf]
    %v1382 = vld [vmem:[%s8 + $0x14] sm:$0xf]
    %v1383 = vld [vmem:[%s8 + $0x18] sm:$0xf]
    %v1384 = vld [vmem:[%s8 + $0x1c] sm:$0xf]
    %v1385 = vld [vmem:[%s9] sm:$0x1]
    %v1387 = vperm.slane %v1385, 0
    %v1397 = vunpack.c.l.b16 %v1377
    %v1398 = vunpack.c.l.b16 %v1378
    %v1399 = vunpack.c.l.b16 %v1379
    %v1400 = vunpack.c.l.b16 %v1380
    %v1401 = vunpack.c.l.b16 %v1381
    %v1402 = vunpack.c.l.b16 %v1382
    %v1403 = vunpack.c.l.b16 %v1383
    %v1404 = vunpack.c.l.b16 %v1384
    %v1405 = vpack.c.b16 %v1398, %v1397
    %v1406 = vpack.c.b16 %v1400, %v1399
    %v1407 = vpack.c.b16 %v1402, %v1401
    %v1408 = vpack.c.b16 %v1404, %v1403
    %vm1413 = vcmask 523264
    %v1415 = vsel %vm1413, %v1375, 0
    %v1418 = vsel %vm1413, %v1376, 0
    %1420 = vmatpush.bf16.msra.mxu0 0
    %1421 = vmatpush.bf16.msra.mxu0 0
    %1422 = vmatpush.bf16.msra.mxu0 0
    %1423 = vmatpush.bf16.msra.mxu0 0
    %1424 = vmatpush.bf16.msra.mxu0 %v1408
    %1425 = vmatpush.bf16.msra.mxu0 %v1407
    %1426 = vmatpush.bf16.msra.mxu0 %v1406
    %1427 = vmatpush.bf16.msra.mxu0 %v1405
    %1428 = vmatmul.bf16.gmra.mxu0 %v1415
    %v1429 = vpop.f32.mrf.mxu0
    %v1430 = vadd.f32 %v1387, %v1429
    %v1431 = vpop.f32.mrf.mxu0
    %v1432 = vadd.f32 %v1387, %v1431
    %1433 = vmatmul.bf16.gmra.mxu0 %v1418
    %v1434 = vpop.f32.mrf.mxu0
    %v1435 = vadd.f32 %v1387, %v1434
    %v1436 = vpop.f32.mrf.mxu0
    %v1437 = vadd.f32 %v1387, %v1436
    %1438 = vdwg.mxu0
    %v1439 = vadd.f32 %v1320, %v1430
    %v1440 = vadd.f32 %v1321, %v1432
    %v1441 = vadd.f32 %v1322, %v1435
    %v1442 = vadd.f32 %v1323, %v1437
    %v1443 = vsel %vm134, %v1439, 0.0
    %1444 = vadd.xlane.f32.xlu0 %v1443
    %v1445 = vpop.xlane.xlu0 %1444
    %v1446 = vsel %vm134, %v1440, 0.0
    %1447 = vadd.xlane.f32.xlu0 %v1446
    %v1448 = vpop.xlane.xlu0 %1447
    %v1449 = vsel %vm134, %v1441, 0.0
    %1450 = vadd.xlane.f32.xlu0 %v1449
    %v1451 = vpop.xlane.xlu0 %1450
    %v1452 = vsel %vm134, %v1442, 0.0
    %1453 = vadd.xlane.f32.xlu0 %v1452
    %v1454 = vpop.xlane.xlu0 %1453
    %v1455 = vmul.f32 %v1445, %v1231
    %v1456 = vmul.f32 %v1448, %v1231
    %v1457 = vmul.f32 %v1451, %v1231
    %v1458 = vmul.f32 %v1454, %v1231
    %v1459 = vsub.f32 %v1439, %v1455
    %v1460 = vsub.f32 %v1440, %v1456
    %v1461 = vsub.f32 %v1441, %v1457
    %v1462 = vsub.f32 %v1442, %v1458
    %v1463 = vmul.f32 %v1459, %v1459
    %v1464 = vmul.f32 %v1460, %v1460
    %v1465 = vmul.f32 %v1461, %v1461
    %v1466 = vmul.f32 %v1462, %v1462
    %v1467 = vsel %vm134, %v1463, 0.0
    %1468 = vadd.xlane.f32.xlu0 %v1467
    %v1469 = vpop.xlane.xlu0 %1468
    %v1470 = vsel %vm134, %v1464, 0.0
    %1471 = vadd.xlane.f32.xlu0 %v1470
    %v1472 = vpop.xlane.xlu0 %1471
    %v1473 = vsel %vm134, %v1465, 0.0
    %1474 = vadd.xlane.f32.xlu0 %v1473
    %v1475 = vpop.xlane.xlu0 %1474
    %v1476 = vsel %vm134, %v1466, 0.0
    %1477 = vadd.xlane.f32.xlu0 %v1476
    %v1478 = vpop.xlane.xlu0 %1477
    %v1479 = vmul.f32 %v1469, %v1231
    %v1480 = vmul.f32 %v1472, %v1231
    %v1481 = vmul.f32 %v1475, %v1231
    %v1482 = vmul.f32 %v1478, %v1231
    %v1483 = vadd.f32 %v1479, 1e-05
    %v1484 = vadd.f32 %v1480, 1e-05
    %v1485 = vadd.f32 %v1481, 1e-05
    %v1486 = vadd.f32 %v1482, 1e-05
    %v1487 = vrsqrt.pop %v1483
    %v1488 = vmul.f32 %v1487, %v1483
    %v1489 = vmul.f32 %v1488, %v1487
    %v1490 = vmul.f32 0.5, %v1489
    %v1491 = vsub.f32 1.5, %v1490
    %v1492 = vmul.f32 %v1487, %v1491
    %vm1493 = vweird.f32 %v1483
    %vm1494 = vweird.f32 %v1487
    %vm1495 = vmor %vm1493, %vm1494
    %v1496 = vsel %vm1495, %v1487, %v1492
    %v1497 = vrsqrt.pop %v1484
    %v1498 = vmul.f32 %v1497, %v1484
    %v1499 = vmul.f32 %v1498, %v1497
    %v1500 = vmul.f32 0.5, %v1499
    %v1501 = vsub.f32 1.5, %v1500
    %v1502 = vmul.f32 %v1497, %v1501
    %vm1503 = vweird.f32 %v1484
    %vm1504 = vweird.f32 %v1497
    %vm1505 = vmor %vm1503, %vm1504
    %v1506 = vsel %vm1505, %v1497, %v1502
    %v1507 = vrsqrt.pop %v1485
    %v1508 = vmul.f32 %v1507, %v1485
    %v1509 = vmul.f32 %v1508, %v1507
    %v1510 = vmul.f32 0.5, %v1509
    %v1511 = vsub.f32 1.5, %v1510
    %v1512 = vmul.f32 %v1507, %v1511
    %vm1513 = vweird.f32 %v1485
    %vm1514 = vweird.f32 %v1507
    %vm1515 = vmor %vm1513, %vm1514
    %v1516 = vsel %vm1515, %v1507, %v1512
    %v1517 = vrsqrt.pop %v1486
    %v1518 = vmul.f32 %v1517, %v1486
    %v1519 = vmul.f32 %v1518, %v1517
    %v1520 = vmul.f32 0.5, %v1519
    %v1521 = vsub.f32 1.5, %v1520
    %v1522 = vmul.f32 %v1517, %v1521
    %vm1523 = vweird.f32 %v1486
    %vm1524 = vweird.f32 %v1517
    %vm1525 = vmor %vm1523, %vm1524
    %v1526 = vsel %vm1525, %v1517, %v1522
    %v1527 = vmul.f32 %v1459, %v1496
    %v1528 = vmul.f32 %v1460, %v1506
    %v1529 = vmul.f32 %v1461, %v1516
    %v1530 = vmul.f32 %v1462, %v1526
    %v1531 = vld [vmem:[%s12] sm:$0x1]
    %v1533 = vperm.slane %v1531, 0
    %v1535 = vmul.f32 %v1527, %v1533
    %v1536 = vmul.f32 %v1528, %v1533
    %v1537 = vmul.f32 %v1529, %v1533
    %v1538 = vmul.f32 %v1530, %v1533
    %v1539 = vld [vmem:[%s13] sm:$0x1]
    %v1541 = vperm.slane %v1539, 0
    %v1543 = vadd.f32 %v1535, %v1541
    %v1544 = vadd.f32 %v1536, %v1541
    %v1545 = vadd.f32 %v1537, %v1541
    %v1546 = vadd.f32 %v1538, %v1541
    %1547 = vst.msk [vmem:[#allocation8] sm:$0xff] %vm134, %v1543
    %1548 = vst.msk [vmem:[#allocation8 + $0x8] sm:$0xff] %vm134, %v1544
    %1549 = vst.msk [vmem:[#allocation8 + $0x10] sm:$0xff] %vm134, %v1545
    %1550 = vst.msk [vmem:[#allocation8 + $0x18] sm:$0xff] %vm134, %v1546
    // Predicated region
    $region70: #{tpu_custom_call.1} parent=1 // pred_check
      _
    $region71: #{tpu_custom_call.1} parent=1 // pred_check_branch
      %1552 = sbr.rel (0) target = $region73
    $region72: #{tpu_custom_call.1} parent=1 // pred_region
      %1554 = vsyncadd [#allocation4], 0
      %s1555 = sshll.u32 [#allocation8], 4
      %s1556 = int_to_ptr.vmem [resolvable:$true] %s1555
      %s1557 = sshll.u32 %s14, 4
      %s1558 = int_to_ptr.hbm [resolvable:$true] %s1557
      %1563 = dma.vmem_to_hbm [thread:$0]  %s1556, 512, %s1558, [#allocation4], 128, 128, 8
    $region73: #{tpu_custom_call.1} parent=1 // pred_fallthru
      _
    // Predicated region
    $region74: #{tpu_custom_call.1} parent=1 // pred_check
      _
    $region75: #{tpu_custom_call.1} parent=1 // pred_check_branch
      %1565 = sbr.rel (0) target = $region77
    $region76: #{tpu_custom_call.1} parent=1 // pred_region
      %1567 = dma.done [#allocation4], 512
    $region77: #{tpu_custom_call.1} parent=1 // pred_fallthru
      _
    %1568 = vsyncpa [#allocation3], 1
    %1569 = vsyncpa [#allocation6], 1
    %1570 = vsyncpa [#allocation4], 1

</llo_original>
